<compile_context>
chip_gen: v5e
topology: v5e:2x2
jax: 0.10.0
libtpu: 0.0.40
codegen_flags: <defaults>
</compile_context>

<pallas_src>
import functools

import jax
import jax.numpy as jnp
from jax import lax
from jax.experimental import pallas as pl
from jax.experimental.pallas import tpu as pltpu


# ---------------------------------------------------------------------------
# Fused kernel: LinearEncoder + reparam + LinearDecoder + inner-product adj
# ---------------------------------------------------------------------------
def fused_vae_kernel(x_ref, eps_ref, w_ref, b_ref, out_ref, *,
                     input_dim, hidden_dim, latent_dim):
    D, H, L = input_dim, hidden_dim, latent_dim
    n = x_ref.shape[0]
    out_w = out_ref.shape[1]
    bf16 = jnp.bfloat16

    # --- carve the packed bf16 weight slab / f32 bias slab (static slices) ---
    r = 0
    w1 = w_ref[r:r + D, :H]; r += D            # (D, H)
    w2 = w_ref[r:r + H, :H]; r += H            # (H, H)
    wz = w_ref[r:r + H, :2 * L]; r += H        # (H, 2L) = w3 @ [wmu | wlv] (folded)
    v1 = w_ref[r:r + L, :H]; r += L            # (L, H)
    v2 = w_ref[r:r + H, :H]; r += H            # (H, H)
    v3 = w_ref[r:r + H, :D]; r += H            # (H, D)

    b1 = b_ref[0:1, :H]
    b2 = b_ref[1:2, :H]
    bz = b_ref[2:3, :2 * L]
    c1 = b_ref[3:4, :H]
    c2 = b_ref[4:5, :H]
    c3 = b_ref[5:6, :D]

    x = x_ref[...]

    # --- LinearEncoder.network: Linear->ReLU->(Dropout)->Linear->ReLU->(Dropout)
    #     -> Linear; the final activation-free Linear is folded into the heads ---
    h = jnp.maximum(
        jnp.dot(x.astype(bf16), w1, preferred_element_type=jnp.float32) + b1, 0.0)
    h = jnp.maximum(
        jnp.dot(h.astype(bf16), w2, preferred_element_type=jnp.float32) + b2, 0.0)
    heads = jnp.dot(h.astype(bf16), wz, preferred_element_type=jnp.float32) + bz
    q_m = heads[:, :L]
    q_s = heads[:, L:]        # raw logvar head (PyTorch LinearEncoder returns q_s raw)

    # --- std = softplus(logvar) + 1e-6 ; q_z = Normal(q_m, std).rsample() ---
    std = jax.nn.softplus(q_s) + 1e-6
    q_z = q_m + std * eps_ref[...]

    # --- LinearDecoder: Linear->ReLU->Linear->ReLU->Linear->Softmax ---
    zb = q_z.astype(bf16)
    d = jnp.maximum(jnp.dot(zb, v1, preferred_element_type=jnp.float32) + c1, 0.0)
    d = jnp.maximum(
        jnp.dot(d.astype(bf16), v2, preferred_element_type=jnp.float32) + c2, 0.0)
    logits = jnp.dot(d.astype(bf16), v3, preferred_element_type=jnp.float32) + c3
    m = jnp.max(logits, axis=-1, keepdims=True)
    e = jnp.exp(logits - m)
    pred_x = e / jnp.sum(e, axis=-1, keepdims=True)   # exact divide (may feed NLL)

    # --- structure decoder (inner product): sigmoid(q_z @ q_z.T)
    #     contraction over the last dims of both operands; at (128,16)x(128,16)^T
    #     any relayout the transposed-rhs form might need is negligible ---
    adj_logits = lax.dot_general(zb, zb, (((1,), (1,)), ((), ())),
                                 preferred_element_type=jnp.float32)
    adj = jax.nn.sigmoid(adj_logits)
    # TODO(synk): GraphStructureDecoder source unavailable -- thresholding /
    # sparse (pred_edge_index, pred_edge_weight) extraction not reproduced.

    # --- single lane-dense output slab: rows [0,N) = [q_z|q_m|q_s|pred_x|pad],
    #     rows [N,2N) = [pred_adj|pad]; both stores are full-lane-width vst ---
    used = 3 * L + D
    top = [q_z, q_m, q_s, pred_x]
    if out_w > used:
        top.append(jnp.zeros((n, out_w - used), jnp.float32))
    out_ref[0:n, :] = jnp.concatenate(top, axis=-1)
    if out_w > n:
        adj = jnp.concatenate([adj, jnp.zeros((n, out_w - n), jnp.float32)], axis=-1)
    out_ref[n:, :] = adj


# ---------------------------------------------------------------------------
# Wrapper
# ---------------------------------------------------------------------------
def graph_vae_forward(x, eps, params):
    N, D = x.shape
    H = params["w1"].shape[1]
    L = params["wmu"].shape[1]

    # fold encoder layer-3 into the mu/logvar head (no nonlinearity between them)
    w_heads = jnp.concatenate([params["wmu"], params["wlv"]], axis=1)   # (H, 2L)
    b_heads = jnp.concatenate([params["bmu"], params["blv"]], axis=1)   # (1, 2L)
    wz = jnp.dot(params["w3"], w_heads)                                 # (H, 2L)
    bz = jnp.dot(params["b3"], w_heads) + b_heads                       # (1, 2L)

    # pack all weights into one bf16 slab (row-stacked, lane-padded to max width)
    # and all biases into one small f32 slab (one bias per row)
    w_mats = [params["w1"], params["w2"], wz,
              params["v1"], params["v2"], params["v3"]]
    biases = [params["b1"], params["b2"], bz,
              params["c1"], params["c2"], params["c3"]]
    wb = max(m.shape[1] for m in w_mats + biases)
    w_slab = jnp.concatenate(
        [jnp.pad(m, ((0, 0), (0, wb - m.shape[1]))) for m in w_mats],
        axis=0).astype(jnp.bfloat16)                                    # (176, 32)
    b_slab = jnp.concatenate(
        [jnp.pad(b, ((0, 0), (0, wb - b.shape[1]))) for b in biases],
        axis=0).astype(jnp.float32)                                     # (6, 32)

    used = 3 * L + D
    out_w = max(pl.cdiv(used, 128) * 128, pl.cdiv(N, 128) * 128)

    kernel = functools.partial(fused_vae_kernel,
                               input_dim=D, hidden_dim=H, latent_dim=L)

    # gridless call: whole (tiny) working set lives in VMEM, no pipeline machinery
    # TODO(synk): for large N, re-tile node rows / 2D-tile the (N, N) adjacency
    # (v7x 64 MiB VMEM hits the wall ~2x earlier than v6e/v5e).
    vmem = pl.BlockSpec(memory_space=pltpu.MemorySpace.VMEM)
    out = pl.pallas_call(
        kernel,
        out_shape=jax.ShapeDtypeStruct((2 * N, out_w), jnp.float32),
        in_specs=[vmem, vmem, vmem, vmem],
        out_specs=vmem,
    )(x, eps, w_slab, b_slab)

    # split the lane-dense slab in the wrapper (layout plumbing, XLA slices)
    q_z = out[:N, 0 * L:1 * L]
    q_m = out[:N, 1 * L:2 * L]
    q_s = out[:N, 2 * L:3 * L]
    pred_x = out[:N, 3 * L:3 * L + D]
    pred_adj = out[N:, :N]
    return q_z, q_m, q_s, pred_adj, pred_x


# ---------------------------------------------------------------------------
# Deterministic parameter init (xavier-uniform weights, zero biases)
# ---------------------------------------------------------------------------
def xavier_uniform(key, fan_in, fan_out):
    bound = (6.0 / (fan_in + fan_out)) ** 0.5
    return jax.random.uniform(key, (fan_in, fan_out), jnp.float32, -bound, bound)


def make_params(key, input_dim, hidden_dim, latent_dim):
    keys = jax.random.split(key, 8)
    z = lambda d: jnp.zeros((1, d), jnp.float32)
    return {
        # LinearEncoder (hidden_layers=2): in->h, h->h, h->h, then mu/logvar heads
        "w1": xavier_uniform(keys[0], input_dim, hidden_dim),  "b1": z(hidden_dim),
        "w2": xavier_uniform(keys[1], hidden_dim, hidden_dim), "b2": z(hidden_dim),
        "w3": xavier_uniform(keys[2], hidden_dim, hidden_dim), "b3": z(hidden_dim),
        "wmu": xavier_uniform(keys[3], hidden_dim, latent_dim), "bmu": z(latent_dim),
        "wlv": xavier_uniform(keys[4], hidden_dim, latent_dim), "blv": z(latent_dim),
        # LinearDecoder: latent->h, h->h, h->input_dim, softmax
        "v1": xavier_uniform(keys[5], latent_dim, hidden_dim), "c1": z(hidden_dim),
        "v2": xavier_uniform(keys[6], hidden_dim, hidden_dim), "c2": z(hidden_dim),
        "v3": xavier_uniform(keys[7], hidden_dim, input_dim),  "c3": z(input_dim),
    }


if __name__ == "__main__":
    N, INPUT_DIM, HIDDEN_DIM, LATENT_DIM = 128, 32, 32, 16

    key = jax.random.PRNGKey(0)
    kx, keps, kp = jax.random.split(key, 3)
    x = jax.random.normal(kx, (N, INPUT_DIM), jnp.float32)
    eps = jax.random.normal(keps, (N, LATENT_DIM), jnp.float32)
    params = make_params(kp, INPUT_DIM, HIDDEN_DIM, LATENT_DIM)

    q_z, q_m, q_s, pred_adj, pred_x = graph_vae_forward(x, eps, params)
    jax.block_until_ready((q_z, q_m, q_s, pred_adj, pred_x))

    assert q_z.shape == (N, LATENT_DIM)
    assert q_m.shape == (N, LATENT_DIM)
    assert q_s.shape == (N, LATENT_DIM)
    assert pred_adj.shape == (N, N)
    assert pred_x.shape == (N, INPUT_DIM)
    # pred_x is a softmax over features: rows sum to ~1 (exact divide in-kernel)
    assert jnp.allclose(jnp.sum(pred_x, axis=-1), 1.0, atol=1e-4)
    # q_z consistency: q_z = q_m + (softplus(q_s) + 1e-6) * eps
    std_ref = jax.nn.softplus(q_s) + 1e-6
    assert jnp.allclose(q_z, q_m + std_ref * eps, atol=1e-5)
    # adjacency symmetry and range
    assert jnp.allclose(pred_adj, pred_adj.T, atol=1e-5)
    assert bool(jnp.all((pred_adj >= 0.0) & (pred_adj <= 1.0)))

    print("KERNEL_OK")
</pallas_src>

<mosaic_0001>
module attributes {stable_mosaic.version = 11 : i64} {
  func.func @fused_vae_kernel(%arg0: memref<128x32xf32, #tpu.memory_space<vmem>>, %arg1: memref<128x16xf32, #tpu.memory_space<vmem>>, %arg2: memref<176x32xbf16, #tpu.memory_space<vmem>>, %arg3: memref<6x32xf32, #tpu.memory_space<vmem>>, %arg4: memref<256x128xf32, #tpu.memory_space<vmem>>) attributes {dimension_semantics = [], scalar_prefetch = 0 : i64, scratch_operands = 0 : i64, tpu.core_type = #tpu.core_type<tc>} {
    %c0 = arith.constant 0 : index
    %c0_0 = arith.constant 0 : index
    %0 = vector.load %arg2[%c0, %c0_0] : memref<176x32xbf16, #tpu.memory_space<vmem>>, vector<32x32xbf16>
    %c32 = arith.constant 32 : index
    %c0_1 = arith.constant 0 : index
    %1 = vector.load %arg2[%c32, %c0_1] : memref<176x32xbf16, #tpu.memory_space<vmem>>, vector<32x32xbf16>
    %c64 = arith.constant 64 : index
    %c0_2 = arith.constant 0 : index
    %2 = vector.load %arg2[%c64, %c0_2] : memref<176x32xbf16, #tpu.memory_space<vmem>>, vector<32x32xbf16>
    %c96 = arith.constant 96 : index
    %c0_3 = arith.constant 0 : index
    %3 = vector.load %arg2[%c96, %c0_3] : memref<176x32xbf16, #tpu.memory_space<vmem>>, vector<16x32xbf16>
    %c112 = arith.constant 112 : index
    %c0_4 = arith.constant 0 : index
    %4 = vector.load %arg2[%c112, %c0_4] : memref<176x32xbf16, #tpu.memory_space<vmem>>, vector<32x32xbf16>
    %c144 = arith.constant 144 : index
    %c0_5 = arith.constant 0 : index
    %5 = vector.load %arg2[%c144, %c0_5] : memref<176x32xbf16, #tpu.memory_space<vmem>>, vector<32x32xbf16>
    %c0_6 = arith.constant 0 : index
    %c0_7 = arith.constant 0 : index
    %6 = vector.load %arg3[%c0_6, %c0_7] : memref<6x32xf32, #tpu.memory_space<vmem>>, vector<1x32xf32>
    %c1 = arith.constant 1 : index
    %c0_8 = arith.constant 0 : index
    %7 = vector.load %arg3[%c1, %c0_8] : memref<6x32xf32, #tpu.memory_space<vmem>>, vector<1x32xf32>
    %c2 = arith.constant 2 : index
    %c0_9 = arith.constant 0 : index
    %8 = vector.load %arg3[%c2, %c0_9] : memref<6x32xf32, #tpu.memory_space<vmem>>, vector<1x32xf32>
    %c3 = arith.constant 3 : index
    %c0_10 = arith.constant 0 : index
    %9 = vector.load %arg3[%c3, %c0_10] : memref<6x32xf32, #tpu.memory_space<vmem>>, vector<1x32xf32>
    %c4 = arith.constant 4 : index
    %c0_11 = arith.constant 0 : index
    %10 = vector.load %arg3[%c4, %c0_11] : memref<6x32xf32, #tpu.memory_space<vmem>>, vector<1x32xf32>
    %c5 = arith.constant 5 : index
    %c0_12 = arith.constant 0 : index
    %11 = vector.load %arg3[%c5, %c0_12] : memref<6x32xf32, #tpu.memory_space<vmem>>, vector<1x32xf32>
    %c0_13 = arith.constant 0 : index
    %c0_14 = arith.constant 0 : index
    %12 = vector.load %arg0[%c0_13, %c0_14] : memref<128x32xf32, #tpu.memory_space<vmem>>, vector<128x32xf32>
    %13 = arith.truncf %12 : vector<128x32xf32> to vector<128x32xbf16>
    %cst = arith.constant dense<0.000000e+00> : vector<128x32xf32>
    %14 = tpu.matmul %13, %0, %cst {dimension_numbers = #tpu.dot_dimension_numbers<[1], [0], [0], [1], [0, 0, 1, 1], [], []>} : vector<128x32xbf16>, vector<32x32xbf16>, vector<128x32xf32> -> vector<128x32xf32>
    %15 = vector.broadcast %6 : vector<1x32xf32> to vector<128x32xf32>
    %16 = arith.addf %14, %15 : vector<128x32xf32>
    %cst_15 = arith.constant 0.000000e+00 : f32
    %17 = vector.broadcast %cst_15 : f32 to vector<128x32xf32>
    %18 = arith.maximumf %16, %17 : vector<128x32xf32>
    %19 = arith.truncf %18 : vector<128x32xf32> to vector<128x32xbf16>
    %cst_16 = arith.constant dense<0.000000e+00> : vector<128x32xf32>
    %20 = tpu.matmul %19, %1, %cst_16 {dimension_numbers = #tpu.dot_dimension_numbers<[1], [0], [0], [1], [0, 0, 1, 1], [], []>} : vector<128x32xbf16>, vector<32x32xbf16>, vector<128x32xf32> -> vector<128x32xf32>
    %21 = vector.broadcast %7 : vector<1x32xf32> to vector<128x32xf32>
    %22 = arith.addf %20, %21 : vector<128x32xf32>
    %cst_17 = arith.constant 0.000000e+00 : f32
    %23 = vector.broadcast %cst_17 : f32 to vector<128x32xf32>
    %24 = arith.maximumf %22, %23 : vector<128x32xf32>
    %25 = arith.truncf %24 : vector<128x32xf32> to vector<128x32xbf16>
    %cst_18 = arith.constant dense<0.000000e+00> : vector<128x32xf32>
    %26 = tpu.matmul %25, %2, %cst_18 {dimension_numbers = #tpu.dot_dimension_numbers<[1], [0], [0], [1], [0, 0, 1, 1], [], []>} : vector<128x32xbf16>, vector<32x32xbf16>, vector<128x32xf32> -> vector<128x32xf32>
    %27 = vector.broadcast %8 : vector<1x32xf32> to vector<128x32xf32>
    %28 = arith.addf %26, %27 : vector<128x32xf32>
    %29 = vector.extract_strided_slice %28 {offsets = [0, 0], sizes = [128, 16], strides = [1, 1]} : vector<128x32xf32> to vector<128x16xf32>
    %30 = vector.extract_strided_slice %28 {offsets = [0, 16], sizes = [128, 16], strides = [1, 1]} : vector<128x32xf32> to vector<128x16xf32>
    %cst_19 = arith.constant 0.000000e+00 : f32
    %31 = vector.broadcast %cst_19 : f32 to vector<128x16xf32>
    %32 = arith.maximumf %30, %31 : vector<128x16xf32>
    %33 = vector.broadcast %cst_19 : f32 to vector<128x16xf32>
    %34 = arith.subf %30, %33 : vector<128x16xf32>
    %35 = arith.cmpf one, %34, %34 : vector<128x16xf32>
    %36 = vector.broadcast %cst_19 : f32 to vector<128x16xf32>
    %37 = arith.addf %30, %36 : vector<128x16xf32>
    %38 = math.absf %34 : vector<128x16xf32>
    %cst_20 = arith.constant 0.000000e+00 : f32
    %39 = vector.broadcast %cst_20 : f32 to vector<128x16xf32>
    %40 = arith.subf %39, %38 : vector<128x16xf32>
    %41 = math.exp %40 : vector<128x16xf32>
    %42 = math.log1p %41 : vector<128x16xf32>
    %43 = arith.addf %32, %42 : vector<128x16xf32>
    %44 = arith.select %35, %37, %43 : vector<128x16xi1>, vector<128x16xf32>
    %cst_21 = arith.constant 9.99999997E-7 : f32
    %45 = vector.broadcast %cst_21 : f32 to vector<128x16xf32>
    %46 = arith.addf %44, %45 : vector<128x16xf32>
    %c0_22 = arith.constant 0 : index
    %c0_23 = arith.constant 0 : index
    %47 = vector.load %arg1[%c0_22, %c0_23] : memref<128x16xf32, #tpu.memory_space<vmem>>, vector<128x16xf32>
    %48 = arith.mulf %46, %47 : vector<128x16xf32>
    %49 = arith.addf %29, %48 : vector<128x16xf32>
    %50 = arith.truncf %49 : vector<128x16xf32> to vector<128x16xbf16>
    %cst_24 = arith.constant dense<0.000000e+00> : vector<128x32xf32>
    %51 = tpu.matmul %50, %3, %cst_24 {dimension_numbers = #tpu.dot_dimension_numbers<[1], [0], [0], [1], [0, 0, 1, 1], [], []>} : vector<128x16xbf16>, vector<16x32xbf16>, vector<128x32xf32> -> vector<128x32xf32>
    %52 = vector.broadcast %9 : vector<1x32xf32> to vector<128x32xf32>
    %53 = arith.addf %51, %52 : vector<128x32xf32>
    %cst_25 = arith.constant 0.000000e+00 : f32
    %54 = vector.broadcast %cst_25 : f32 to vector<128x32xf32>
    %55 = arith.maximumf %53, %54 : vector<128x32xf32>
    %56 = arith.truncf %55 : vector<128x32xf32> to vector<128x32xbf16>
    %cst_26 = arith.constant dense<0.000000e+00> : vector<128x32xf32>
    %57 = tpu.matmul %56, %4, %cst_26 {dimension_numbers = #tpu.dot_dimension_numbers<[1], [0], [0], [1], [0, 0, 1, 1], [], []>} : vector<128x32xbf16>, vector<32x32xbf16>, vector<128x32xf32> -> vector<128x32xf32>
    %58 = vector.broadcast %10 : vector<1x32xf32> to vector<128x32xf32>
    %59 = arith.addf %57, %58 : vector<128x32xf32>
    %cst_27 = arith.constant 0.000000e+00 : f32
    %60 = vector.broadcast %cst_27 : f32 to vector<128x32xf32>
    %61 = arith.maximumf %59, %60 : vector<128x32xf32>
    %62 = arith.truncf %61 : vector<128x32xf32> to vector<128x32xbf16>
    %cst_28 = arith.constant dense<0.000000e+00> : vector<128x32xf32>
    %63 = tpu.matmul %62, %5, %cst_28 {dimension_numbers = #tpu.dot_dimension_numbers<[1], [0], [0], [1], [0, 0, 1, 1], [], []>} : vector<128x32xbf16>, vector<32x32xbf16>, vector<128x32xf32> -> vector<128x32xf32>
    %64 = vector.broadcast %11 : vector<1x32xf32> to vector<128x32xf32>
    %65 = arith.addf %63, %64 : vector<128x32xf32>
    %cst_29 = arith.constant dense<0xFF800000> : vector<128xf32>
    %66 = vector.multi_reduction <maximumf>, %65, %cst_29 [1] : vector<128x32xf32> to vector<128xf32>
    %67 = vector.shape_cast %66 : vector<128xf32> to vector<128x1xf32>
    %68 = vector.broadcast %67 : vector<128x1xf32> to vector<128x32xf32>
    %69 = arith.subf %65, %68 : vector<128x32xf32>
    %70 = math.exp %69 : vector<128x32xf32>
    %cst_30 = arith.constant dense<0.000000e+00> : vector<128xf32>
    %71 = vector.multi_reduction <add>, %70, %cst_30 [1] : vector<128x32xf32> to vector<128xf32>
    %72 = vector.shape_cast %71 : vector<128xf32> to vector<128x1xf32>
    %73 = vector.broadcast %72 : vector<128x1xf32> to vector<128x32xf32>
    %74 = arith.divf %70, %73 : vector<128x32xf32>
    %cst_31 = arith.constant dense<0.000000e+00> : vector<128x128xf32>
    %75 = tpu.matmul %50, %50, %cst_31 {dimension_numbers = #tpu.dot_dimension_numbers<[1], [1], [0], [0], [0, 0, 1, 0], [], []>} : vector<128x16xbf16>, vector<128x16xbf16>, vector<128x128xf32> -> vector<128x128xf32>
    %76 = arith.negf %75 : vector<128x128xf32>
    %77 = math.exp %76 : vector<128x128xf32>
    %cst_32 = arith.constant 1.000000e+00 : f32
    %78 = vector.broadcast %cst_32 : f32 to vector<128x128xf32>
    %79 = arith.addf %78, %77 : vector<128x128xf32>
    %80 = arith.divf %78, %79 : vector<128x128xf32>
    %cst_33 = arith.constant 0.000000e+00 : f32
    %81 = vector.broadcast %cst_33 : f32 to vector<128x48xf32>
    %82 = tpu.concatenate %49, %29, %30, %74, %81 in 1 : vector<128x16xf32>, vector<128x16xf32>, vector<128x16xf32>, vector<128x32xf32>, vector<128x48xf32> -> vector<128x128xf32>
    %c0_34 = arith.constant 0 : index
    %c0_35 = arith.constant 0 : index
    %83 = vector.load %arg4[%c0_34, %c0_35] : memref<256x128xf32, #tpu.memory_space<vmem>>, vector<128x128xf32>
    tpu.vector_store %arg4[%c0_34, %c0_35], %82 {strides = array<i32>} : memref<256x128xf32, #tpu.memory_space<vmem>>, vector<128x128xf32>,
    %c128 = arith.constant 128 : index
    %c0_36 = arith.constant 0 : index
    %84 = vector.load %arg4[%c128, %c0_36] : memref<256x128xf32, #tpu.memory_space<vmem>>, vector<128x128xf32>
    tpu.vector_store %arg4[%c128, %c0_36], %80 {strides = array<i32>} : memref<256x128xf32, #tpu.memory_space<vmem>>, vector<128x128xf32>,
    return
  }
}

</mosaic_0001>

<llo_original>
// kernel: tpu_custom_call.1
$region0: #{tpu_custom_call.1}
  #allocation0 [shape = 'u32[]', space=smem, size = 0x4, offset = 0x4, fixed_abs, tag = 'smem constant byte address 0x4 - core index']
  #allocation1 [shape = 'u32[72,128]{1,0:T(1,128)}', space=vmem, size = 0x9000, scoped, tag = 'internal scratch']
  %s0 = inlined_call_operand.vmem [shape: f32[128,32], index: 0, kind: input, shape index: {}]
  %s1 = inlined_call_operand.vmem [shape: f32[128,16], index: 1, kind: input, shape index: {}]
  %s2 = inlined_call_operand.vmem [shape: bf16[176,32], index: 2, kind: input, shape index: {}]
  %s3 = inlined_call_operand.vmem [shape: f32[6,32], index: 3, kind: input, shape index: {}]
  %s4 = inlined_call_operand.hbm [shape: f32[256,128], index: 4, kind: output, shape index: {}]
  %s5 = sld [smem:[#allocation0]]
  $region26: #{tpu_custom_call.1} parent=0
    _
  %s7 = ssub.s32 1, %s5
  %s8 = scalar_select 0, %s7, %s5
  $region1: #{tpu_custom_call.1} parent=0
    #allocation2 [shape = 'u8[131072]{0}', space=vmem, size = 0x20000, scoped, tag = 'output window, operand 0, single buffered']
    #allocation3 [shape = 's32[1]{0}', space=sflag, size = 0x4, scoped, tag = 'scoped memory for tpu_custom_call.1']
    %9 = vsyncpa [#allocation3], 0
    // Predicated region
    $region2: #{tpu_custom_call.1} parent=1 // pred_check
      _
    $region3: #{tpu_custom_call.1} parent=1 // pred_check_branch
      %11 = sbr.rel (0) target = $region5
    $region4: #{tpu_custom_call.1} parent=1 // pred_region
      _
    $region5: #{tpu_custom_call.1} parent=1 // pred_fallthru
      _
    // Predicated region
    $region6: #{tpu_custom_call.1} parent=1 // pred_check
      _
    $region7: #{tpu_custom_call.1} parent=1 // pred_check_branch
      %13 = sbr.rel (0) target = $region9
    $region8: #{tpu_custom_call.1} parent=1 // pred_region
      _
    $region9: #{tpu_custom_call.1} parent=1 // pred_fallthru
      _
    // Predicated region
    $region10: #{tpu_custom_call.1} parent=1 // pred_check
      _
    $region11: #{tpu_custom_call.1} parent=1 // pred_check_branch
      %15 = sbr.rel (0) target = $region13
    $region12: #{tpu_custom_call.1} parent=1 // pred_region
      _
    $region13: #{tpu_custom_call.1} parent=1 // pred_fallthru
      _
    // Predicated region
    $region14: #{tpu_custom_call.1} parent=1 // pred_check
      _
    $region15: #{tpu_custom_call.1} parent=1 // pred_check_branch
      %17 = sbr.rel (0) target = $region17
    $region16: #{tpu_custom_call.1} parent=1 // pred_region
      _
    $region17: #{tpu_custom_call.1} parent=1 // pred_fallthru
      _
    %v19 = vld [vmem:[%s2] sm:$0xf]
    %v20 = vld [vmem:[%s2 + $0x4] sm:$0xf]
    %v21 = vld [vmem:[%s2 + $0x8] sm:$0xf]
    %v22 = vld [vmem:[%s2 + $0xc] sm:$0xf]
    %v23 = vld [vmem:[%s2 + $0x10] sm:$0xf]
    %v24 = vld [vmem:[%s2 + $0x14] sm:$0xf]
    %v25 = vld [vmem:[%s2 + $0x18] sm:$0xf]
    %v26 = vld [vmem:[%s2 + $0x1c] sm:$0xf]
    %v27 = vld [vmem:[%s2 + $0x20] sm:$0xf]
    %v28 = vld [vmem:[%s2 + $0x24] sm:$0xf]
    %v29 = vld [vmem:[%s2 + $0x28] sm:$0xf]
    %v30 = vld [vmem:[%s2 + $0x2c] sm:$0xf]
    %v31 = vld [vmem:[%s2 + $0x30] sm:$0xf]
    %v32 = vld [vmem:[%s2 + $0x34] sm:$0xf]
    %v33 = vld [vmem:[%s2 + $0x38] sm:$0xf]
    %v34 = vld [vmem:[%s2 + $0x3c] sm:$0xf]
    %v35 = vld [vmem:[%s2 + $0x40] sm:$0xf]
    %v36 = vld [vmem:[%s2 + $0x44] sm:$0xf]
    %v37 = vld [vmem:[%s2 + $0x48] sm:$0xf]
    %v38 = vld [vmem:[%s2 + $0x4c] sm:$0xf]
    %v39 = vld [vmem:[%s2 + $0x50] sm:$0xf]
    %v40 = vld [vmem:[%s2 + $0x54] sm:$0xf]
    %v41 = vld [vmem:[%s3] sm:$0x1]
    %v42 = vld [vmem:[%s3 + $0x1] sm:$0x1]
    %v43 = vld [vmem:[%s3 + $0x2] sm:$0x1]
    %v44 = vld [vmem:[%s3 + $0x3] sm:$0x1]
    %v45 = vld [vmem:[%s3 + $0x4] sm:$0x1]
    %v46 = vld [vmem:[%s3 + $0x5] sm:$0x1]
    %v47 = vld [vmem:[%s0] sm:$0xff]
    %v48 = vld [vmem:[%s0 + $0x8] sm:$0xff]
    %v49 = vld [vmem:[%s0 + $0x10] sm:$0xff]
    %v50 = vld [vmem:[%s0 + $0x18] sm:$0xff]
    %v51 = vld [vmem:[%s0 + $0x20] sm:$0xff]
    %v52 = vld [vmem:[%s0 + $0x28] sm:$0xff]
    %v53 = vld [vmem:[%s0 + $0x30] sm:$0xff]
    %v54 = vld [vmem:[%s0 + $0x38] sm:$0xff]
    %v55 = vld [vmem:[%s0 + $0x40] sm:$0xff]
    %v56 = vld [vmem:[%s0 + $0x48] sm:$0xff]
    %v57 = vld [vmem:[%s0 + $0x50] sm:$0xff]
    %v58 = vld [vmem:[%s0 + $0x58] sm:$0xff]
    %v59 = vld [vmem:[%s0 + $0x60] sm:$0xff]
    %v60 = vld [vmem:[%s0 + $0x68] sm:$0xff]
    %v61 = vld [vmem:[%s0 + $0x70] sm:$0xff]
    %v62 = vld [vmem:[%s0 + $0x78] sm:$0xff]
    %v63 = vpack.c.bf16 %v48, %v47
    %v64 = vpack.c.bf16 %v50, %v49
    %v65 = vpack.c.bf16 %v52, %v51
    %v66 = vpack.c.bf16 %v54, %v53
    %v67 = vpack.c.bf16 %v56, %v55
    %v68 = vpack.c.bf16 %v58, %v57
    %v69 = vpack.c.bf16 %v60, %v59
    %v70 = vpack.c.bf16 %v62, %v61
    %v71 = vperm.slane %v41, 0
    %v76 = vunpack.c.l.b16 %v19
    %v77 = vunpack.c.l.b16 %v20
    %v78 = vunpack.c.l.b16 %v21
    %v79 = vunpack.c.l.b16 %v22
    %v80 = vpack.c.b16 %v77, %v76
    %v81 = vpack.c.b16 %v79, %v78
    %vm84 = vcmask 261120
    %v86 = vsel %vm84, %v63, 0
    %v89 = vsel %vm84, %v64, 0
    %v92 = vsel %vm84, %v65, 0
    %v95 = vsel %vm84, %v66, 0
    %v98 = vsel %vm84, %v67, 0
    %v101 = vsel %vm84, %v68, 0
    %v104 = vsel %vm84, %v69, 0
    %v107 = vsel %vm84, %v70, 0
    %109 = vmatpush.bf16.msra.mxu0 0
    %110 = vmatpush.bf16.msra.mxu0 0
    %111 = vmatpush.bf16.msra.mxu0 0
    %112 = vmatpush.bf16.msra.mxu0 0
    %113 = vmatpush.bf16.msra.mxu0 0
    %114 = vmatpush.bf16.msra.mxu0 0
    %115 = vmatpush.bf16.msra.mxu0 %v81
    %116 = vmatpush.bf16.msra.mxu0 %v80
    %117 = vmatmul.bf16.gmra.mxu0 %v86
    %v118 = vpop.f32.mrf.mxu0
    %v119 = vadd.f32 %v71, %v118
    %v120 = vpop.f32.mrf.mxu0
    %v121 = vadd.f32 %v71, %v120
    %122 = vmatmul.bf16.gmra.mxu0 %v89
    %v123 = vpop.f32.mrf.mxu0
    %v124 = vadd.f32 %v71, %v123
    %v125 = vpop.f32.mrf.mxu0
    %v126 = vadd.f32 %v71, %v125
    %127 = vmatmul.bf16.gmra.mxu0 %v92
    %v128 = vpop.f32.mrf.mxu0
    %v129 = vadd.f32 %v71, %v128
    %v130 = vpop.f32.mrf.mxu0
    %v131 = vadd.f32 %v71, %v130
    %132 = vmatmul.bf16.gmra.mxu0 %v95
    %v133 = vpop.f32.mrf.mxu0
    %v134 = vadd.f32 %v71, %v133
    %v135 = vpop.f32.mrf.mxu0
    %v136 = vadd.f32 %v71, %v135
    %137 = vmatmul.bf16.gmra.mxu0 %v98
    %v138 = vpop.f32.mrf.mxu0
    %v139 = vadd.f32 %v71, %v138
    %v140 = vpop.f32.mrf.mxu0
    %v141 = vadd.f32 %v71, %v140
    %142 = vmatmul.bf16.gmra.mxu0 %v101
    %v143 = vpop.f32.mrf.mxu0
    %v144 = vadd.f32 %v71, %v143
    %v145 = vpop.f32.mrf.mxu0
    %v146 = vadd.f32 %v71, %v145
    %147 = vmatmul.bf16.gmra.mxu0 %v104
    %v148 = vpop.f32.mrf.mxu0
    %v149 = vadd.f32 %v71, %v148
    %v150 = vpop.f32.mrf.mxu0
    %v151 = vadd.f32 %v71, %v150
    %152 = vmatmul.bf16.gmra.mxu0 %v107
    %v153 = vpop.f32.mrf.mxu0
    %v154 = vadd.f32 %v71, %v153
    %v155 = vpop.f32.mrf.mxu0
    %v156 = vadd.f32 %v71, %v155
    %157 = vdwg.mxu0
    %v158 = vmax.f32 %v119, 0.0
    %v159 = vmax.f32 %v121, 0.0
    %v160 = vmax.f32 %v124, 0.0
    %v161 = vmax.f32 %v126, 0.0
    %v162 = vmax.f32 %v129, 0.0
    %v163 = vmax.f32 %v131, 0.0
    %v164 = vmax.f32 %v134, 0.0
    %v165 = vmax.f32 %v136, 0.0
    %v166 = vmax.f32 %v139, 0.0
    %v167 = vmax.f32 %v141, 0.0
    %v168 = vmax.f32 %v144, 0.0
    %v169 = vmax.f32 %v146, 0.0
    %v170 = vmax.f32 %v149, 0.0
    %v171 = vmax.f32 %v151, 0.0
    %v172 = vmax.f32 %v154, 0.0
    %v173 = vmax.f32 %v156, 0.0
    %v174 = vpack.c.bf16 %v159, %v158
    %v175 = vpack.c.bf16 %v161, %v160
    %v176 = vpack.c.bf16 %v163, %v162
    %v177 = vpack.c.bf16 %v165, %v164
    %v178 = vpack.c.bf16 %v167, %v166
    %v179 = vpack.c.bf16 %v169, %v168
    %v180 = vpack.c.bf16 %v171, %v170
    %v181 = vpack.c.bf16 %v173, %v172
    %v182 = vperm.slane %v42, 0
    %v187 = vunpack.c.l.b16 %v23
    %v188 = vunpack.c.l.b16 %v24
    %v189 = vunpack.c.l.b16 %v25
    %v190 = vunpack.c.l.b16 %v26
    %v191 = vpack.c.b16 %v188, %v187
    %v192 = vpack.c.b16 %v190, %v189
    %v196 = vsel %vm84, %v174, 0
    %v199 = vsel %vm84, %v175, 0
    %v202 = vsel %vm84, %v176, 0
    %v205 = vsel %vm84, %v177, 0
    %v208 = vsel %vm84, %v178, 0
    %v211 = vsel %vm84, %v179, 0
    %v214 = vsel %vm84, %v180, 0
    %v217 = vsel %vm84, %v181, 0
    %219 = vmatpush.bf16.msra.mxu0 0
    %220 = vmatpush.bf16.msra.mxu0 0
    %221 = vmatpush.bf16.msra.mxu0 0
    %222 = vmatpush.bf16.msra.mxu0 0
    %223 = vmatpush.bf16.msra.mxu0 0
    %224 = vmatpush.bf16.msra.mxu0 0
    %225 = vmatpush.bf16.msra.mxu0 %v192
    %226 = vmatpush.bf16.msra.mxu0 %v191
    %227 = vmatmul.bf16.gmra.mxu0 %v196
    %v228 = vpop.f32.mrf.mxu0
    %v229 = vadd.f32 %v182, %v228
    %v230 = vpop.f32.mrf.mxu0
    %v231 = vadd.f32 %v182, %v230
    %232 = vmatmul.bf16.gmra.mxu0 %v199
    %v233 = vpop.f32.mrf.mxu0
    %v234 = vadd.f32 %v182, %v233
    %v235 = vpop.f32.mrf.mxu0
    %v236 = vadd.f32 %v182, %v235
    %237 = vmatmul.bf16.gmra.mxu0 %v202
    %v238 = vpop.f32.mrf.mxu0
    %v239 = vadd.f32 %v182, %v238
    %v240 = vpop.f32.mrf.mxu0
    %v241 = vadd.f32 %v182, %v240
    %242 = vmatmul.bf16.gmra.mxu0 %v205
    %v243 = vpop.f32.mrf.mxu0
    %v244 = vadd.f32 %v182, %v243
    %v245 = vpop.f32.mrf.mxu0
    %v246 = vadd.f32 %v182, %v245
    %247 = vmatmul.bf16.gmra.mxu0 %v208
    %v248 = vpop.f32.mrf.mxu0
    %v249 = vadd.f32 %v182, %v248
    %v250 = vpop.f32.mrf.mxu0
    %v251 = vadd.f32 %v182, %v250
    %252 = vmatmul.bf16.gmra.mxu0 %v211
    %v253 = vpop.f32.mrf.mxu0
    %v254 = vadd.f32 %v182, %v253
    %v255 = vpop.f32.mrf.mxu0
    %v256 = vadd.f32 %v182, %v255
    %257 = vmatmul.bf16.gmra.mxu0 %v214
    %v258 = vpop.f32.mrf.mxu0
    %v259 = vadd.f32 %v182, %v258
    %v260 = vpop.f32.mrf.mxu0
    %v261 = vadd.f32 %v182, %v260
    %262 = vmatmul.bf16.gmra.mxu0 %v217
    %v263 = vpop.f32.mrf.mxu0
    %v264 = vadd.f32 %v182, %v263
    %v265 = vpop.f32.mrf.mxu0
    %v266 = vadd.f32 %v182, %v265
    %267 = vdwg.mxu0
    %v268 = vmax.f32 %v229, 0.0
    %v269 = vmax.f32 %v231, 0.0
    %v270 = vmax.f32 %v234, 0.0
    %v271 = vmax.f32 %v236, 0.0
    %v272 = vmax.f32 %v239, 0.0
    %v273 = vmax.f32 %v241, 0.0
    %v274 = vmax.f32 %v244, 0.0
    %v275 = vmax.f32 %v246, 0.0
    %v276 = vmax.f32 %v249, 0.0
    %v277 = vmax.f32 %v251, 0.0
    %v278 = vmax.f32 %v254, 0.0
    %v279 = vmax.f32 %v256, 0.0
    %v280 = vmax.f32 %v259, 0.0
    %v281 = vmax.f32 %v261, 0.0
    %v282 = vmax.f32 %v264, 0.0
    %v283 = vmax.f32 %v266, 0.0
    %v284 = vpack.c.bf16 %v269, %v268
    %v285 = vpack.c.bf16 %v271, %v270
    %v286 = vpack.c.bf16 %v273, %v272
    %v287 = vpack.c.bf16 %v275, %v274
    %v288 = vpack.c.bf16 %v277, %v276
    %v289 = vpack.c.bf16 %v279, %v278
    %v290 = vpack.c.bf16 %v281, %v280
    %v291 = vpack.c.bf16 %v283, %v282
    %v292 = vperm.slane %v43, 0
    %v297 = vunpack.c.l.b16 %v27
    %v298 = vunpack.c.l.b16 %v28
    %v299 = vunpack.c.l.b16 %v29
    %v300 = vunpack.c.l.b16 %v30
    %v301 = vpack.c.b16 %v298, %v297
    %v302 = vpack.c.b16 %v300, %v299
    %v306 = vsel %vm84, %v284, 0
    %v309 = vsel %vm84, %v285, 0
    %v312 = vsel %vm84, %v286, 0
    %v315 = vsel %vm84, %v287, 0
    %v318 = vsel %vm84, %v288, 0
    %v321 = vsel %vm84, %v289, 0
    %v324 = vsel %vm84, %v290, 0
    %v327 = vsel %vm84, %v291, 0
    %329 = vmatpush.bf16.msra.mxu0 0
    %330 = vmatpush.bf16.msra.mxu0 0
    %331 = vmatpush.bf16.msra.mxu0 0
    %332 = vmatpush.bf16.msra.mxu0 0
    %333 = vmatpush.bf16.msra.mxu0 0
    %334 = vmatpush.bf16.msra.mxu0 0
    %335 = vmatpush.bf16.msra.mxu0 %v302
    %336 = vmatpush.bf16.msra.mxu0 %v301
    %337 = vmatmul.bf16.gmra.mxu0 %v306
    %v338 = vpop.f32.mrf.mxu0
    %v339 = vadd.f32 %v292, %v338
    %v340 = vpop.f32.mrf.mxu0
    %v341 = vadd.f32 %v292, %v340
    %342 = vmatmul.bf16.gmra.mxu0 %v309
    %v343 = vpop.f32.mrf.mxu0
    %v344 = vadd.f32 %v292, %v343
    %v345 = vpop.f32.mrf.mxu0
    %v346 = vadd.f32 %v292, %v345
    %347 = vmatmul.bf16.gmra.mxu0 %v312
    %v348 = vpop.f32.mrf.mxu0
    %v349 = vadd.f32 %v292, %v348
    %v350 = vpop.f32.mrf.mxu0
    %v351 = vadd.f32 %v292, %v350
    %352 = vmatmul.bf16.gmra.mxu0 %v315
    %v353 = vpop.f32.mrf.mxu0
    %v354 = vadd.f32 %v292, %v353
    %v355 = vpop.f32.mrf.mxu0
    %v356 = vadd.f32 %v292, %v355
    %357 = vmatmul.bf16.gmra.mxu0 %v318
    %v358 = vpop.f32.mrf.mxu0
    %v359 = vadd.f32 %v292, %v358
    %v360 = vpop.f32.mrf.mxu0
    %v361 = vadd.f32 %v292, %v360
    %362 = vmatmul.bf16.gmra.mxu0 %v321
    %v363 = vpop.f32.mrf.mxu0
    %v364 = vadd.f32 %v292, %v363
    %v365 = vpop.f32.mrf.mxu0
    %v366 = vadd.f32 %v292, %v365
    %367 = vmatmul.bf16.gmra.mxu0 %v324
    %v368 = vpop.f32.mrf.mxu0
    %v369 = vadd.f32 %v292, %v368
    %v370 = vpop.f32.mrf.mxu0
    %v371 = vadd.f32 %v292, %v370
    %372 = vmatmul.bf16.gmra.mxu0 %v327
    %v373 = vpop.f32.mrf.mxu0
    %v374 = vadd.f32 %v292, %v373
    %v375 = vpop.f32.mrf.mxu0
    %v376 = vadd.f32 %v292, %v375
    %377 = vdwg.mxu0
    %v378 = vmax.f32 %v339, 0.0
    %v379 = vmax.f32 %v341, 0.0
    %v380 = vmax.f32 %v344, 0.0
    %v381 = vmax.f32 %v346, 0.0
    %v382 = vmax.f32 %v349, 0.0
    %v383 = vmax.f32 %v351, 0.0
    %v384 = vmax.f32 %v354, 0.0
    %v385 = vmax.f32 %v356, 0.0
    %v386 = vmax.f32 %v359, 0.0
    %v387 = vmax.f32 %v361, 0.0
    %v388 = vmax.f32 %v364, 0.0
    %v389 = vmax.f32 %v366, 0.0
    %v390 = vmax.f32 %v369, 0.0
    %v391 = vmax.f32 %v371, 0.0
    %v392 = vmax.f32 %v374, 0.0
    %v393 = vmax.f32 %v376, 0.0
    %vm394 = vcmp.ne.f32.partialorder %v339, %v339
    %vm395 = vcmp.ne.f32.partialorder %v341, %v341
    %vm396 = vcmp.ne.f32.partialorder %v344, %v344
    %vm397 = vcmp.ne.f32.partialorder %v346, %v346
    %vm398 = vcmp.ne.f32.partialorder %v349, %v349
    %vm399 = vcmp.ne.f32.partialorder %v351, %v351
    %vm400 = vcmp.ne.f32.partialorder %v354, %v354
    %vm401 = vcmp.ne.f32.partialorder %v356, %v356
    %vm402 = vcmp.ne.f32.partialorder %v359, %v359
    %vm403 = vcmp.ne.f32.partialorder %v361, %v361
    %vm404 = vcmp.ne.f32.partialorder %v364, %v364
    %vm405 = vcmp.ne.f32.partialorder %v366, %v366
    %vm406 = vcmp.ne.f32.partialorder %v369, %v369
    %vm407 = vcmp.ne.f32.partialorder %v371, %v371
    %vm408 = vcmp.ne.f32.partialorder %v374, %v374
    %vm409 = vcmp.ne.f32.partialorder %v376, %v376
    %v410 = vadd.f32 %v339, 0.0
    %v411 = vadd.f32 %v341, 0.0
    %v412 = vadd.f32 %v344, 0.0
    %v413 = vadd.f32 %v346, 0.0
    %v414 = vadd.f32 %v349, 0.0
    %v415 = vadd.f32 %v351, 0.0
    %v416 = vadd.f32 %v354, 0.0
    %v417 = vadd.f32 %v356, 0.0
    %v418 = vadd.f32 %v359, 0.0
    %v419 = vadd.f32 %v361, 0.0
    %v420 = vadd.f32 %v364, 0.0
    %v421 = vadd.f32 %v366, 0.0
    %v422 = vadd.f32 %v369, 0.0
    %v423 = vadd.f32 %v371, 0.0
    %v424 = vadd.f32 %v374, 0.0
    %v425 = vadd.f32 %v376, 0.0
    %v426 = vand.u32 2147483647, %v339
    %v427 = vand.u32 2147483647, %v341
    %v428 = vand.u32 2147483647, %v344
    %v429 = vand.u32 2147483647, %v346
    %v430 = vand.u32 2147483647, %v349
    %v431 = vand.u32 2147483647, %v351
    %v432 = vand.u32 2147483647, %v354
    %v433 = vand.u32 2147483647, %v356
    %v434 = vand.u32 2147483647, %v359
    %v435 = vand.u32 2147483647, %v361
    %v436 = vand.u32 2147483647, %v364
    %v437 = vand.u32 2147483647, %v366
    %v438 = vand.u32 2147483647, %v369
    %v439 = vand.u32 2147483647, %v371
    %v440 = vand.u32 2147483647, %v374
    %v441 = vand.u32 2147483647, %v376
    %v442 = vsub.f32 0.0, %v426
    %v443 = vsub.f32 0.0, %v427
    %v444 = vsub.f32 0.0, %v428
    %v445 = vsub.f32 0.0, %v429
    %v446 = vsub.f32 0.0, %v430
    %v447 = vsub.f32 0.0, %v431
    %v448 = vsub.f32 0.0, %v432
    %v449 = vsub.f32 0.0, %v433
    %v450 = vsub.f32 0.0, %v434
    %v451 = vsub.f32 0.0, %v435
    %v452 = vsub.f32 0.0, %v436
    %v453 = vsub.f32 0.0, %v437
    %v454 = vsub.f32 0.0, %v438
    %v455 = vsub.f32 0.0, %v439
    %v456 = vsub.f32 0.0, %v440
    %v457 = vsub.f32 0.0, %v441
    %v458 = vmul.f32 %v442, 1.442695
    %v459 = vpow.pop %v458
    %v460 = vmul.f32 %v443, 1.442695
    %v461 = vpow.pop %v460
    %v462 = vmul.f32 %v444, 1.442695
    %v463 = vpow.pop %v462
    %v464 = vmul.f32 %v445, 1.442695
    %v465 = vpow.pop %v464
    %v466 = vmul.f32 %v446, 1.442695
    %v467 = vpow.pop %v466
    %v468 = vmul.f32 %v447, 1.442695
    %v469 = vpow.pop %v468
    %v470 = vmul.f32 %v448, 1.442695
    %v471 = vpow.pop %v470
    %v472 = vmul.f32 %v449, 1.442695
    %v473 = vpow.pop %v472
    %v474 = vmul.f32 %v450, 1.442695
    %v475 = vpow.pop %v474
    %v476 = vmul.f32 %v451, 1.442695
    %v477 = vpow.pop %v476
    %v478 = vmul.f32 %v452, 1.442695
    %v479 = vpow.pop %v478
    %v480 = vmul.f32 %v453, 1.442695
    %v481 = vpow.pop %v480
    %v482 = vmul.f32 %v454, 1.442695
    %v483 = vpow.pop %v482
    %v484 = vmul.f32 %v455, 1.442695
    %v485 = vpow.pop %v484
    %v486 = vmul.f32 %v456, 1.442695
    %v487 = vpow.pop %v486
    %v488 = vmul.f32 %v457, 1.442695
    %v489 = vpow.pop %v488
    %v490 = vadd.f32 %v459, 1.0
    %v491 = vlog2.pop %v490
    %v492 = vmul.f32 %v491, 0.6931472
    %v493 = vmul.f32 -0.5, %v459
    %v494 = vadd.f32 %v493, 1.0
    %v495 = vmul.f32 %v494, %v459
    %v496 = vand.u32 2147483647, %v459
    %vm497 = vcmp.lt.f32.partialorder %v496, 0.0004427343
    %v498 = vsel %vm497, %v495, %v492
    %v499 = vadd.f32 %v461, 1.0
    %v500 = vlog2.pop %v499
    %v501 = vmul.f32 %v500, 0.6931472
    %v502 = vmul.f32 -0.5, %v461
    %v503 = vadd.f32 %v502, 1.0
    %v504 = vmul.f32 %v503, %v461
    %v505 = vand.u32 2147483647, %v461
    %vm506 = vcmp.lt.f32.partialorder %v505, 0.0004427343
    %v507 = vsel %vm506, %v504, %v501
    %v508 = vadd.f32 %v463, 1.0
    %v509 = vlog2.pop %v508
    %v510 = vmul.f32 %v509, 0.6931472
    %v511 = vmul.f32 -0.5, %v463
    %v512 = vadd.f32 %v511, 1.0
    %v513 = vmul.f32 %v512, %v463
    %v514 = vand.u32 2147483647, %v463
    %vm515 = vcmp.lt.f32.partialorder %v514, 0.0004427343
    %v516 = vsel %vm515, %v513, %v510
    %v517 = vadd.f32 %v465, 1.0
    %v518 = vlog2.pop %v517
    %v519 = vmul.f32 %v518, 0.6931472
    %v520 = vmul.f32 -0.5, %v465
    %v521 = vadd.f32 %v520, 1.0
    %v522 = vmul.f32 %v521, %v465
    %v523 = vand.u32 2147483647, %v465
    %vm524 = vcmp.lt.f32.partialorder %v523, 0.0004427343
    %v525 = vsel %vm524, %v522, %v519
    %v526 = vadd.f32 %v467, 1.0
    %v527 = vlog2.pop %v526
    %v528 = vmul.f32 %v527, 0.6931472
    %v529 = vmul.f32 -0.5, %v467
    %v530 = vadd.f32 %v529, 1.0
    %v531 = vmul.f32 %v530, %v467
    %v532 = vand.u32 2147483647, %v467
    %vm533 = vcmp.lt.f32.partialorder %v532, 0.0004427343
    %v534 = vsel %vm533, %v531, %v528
    %v535 = vadd.f32 %v469, 1.0
    %v536 = vlog2.pop %v535
    %v537 = vmul.f32 %v536, 0.6931472
    %v538 = vmul.f32 -0.5, %v469
    %v539 = vadd.f32 %v538, 1.0
    %v540 = vmul.f32 %v539, %v469
    %v541 = vand.u32 2147483647, %v469
    %vm542 = vcmp.lt.f32.partialorder %v541, 0.0004427343
    %v543 = vsel %vm542, %v540, %v537
    %v544 = vadd.f32 %v471, 1.0
    %v545 = vlog2.pop %v544
    %v546 = vmul.f32 %v545, 0.6931472
    %v547 = vmul.f32 -0.5, %v471
    %v548 = vadd.f32 %v547, 1.0
    %v549 = vmul.f32 %v548, %v471
    %v550 = vand.u32 2147483647, %v471
    %vm551 = vcmp.lt.f32.partialorder %v550, 0.0004427343
    %v552 = vsel %vm551, %v549, %v546
    %v553 = vadd.f32 %v473, 1.0
    %v554 = vlog2.pop %v553
    %v555 = vmul.f32 %v554, 0.6931472
    %v556 = vmul.f32 -0.5, %v473
    %v557 = vadd.f32 %v556, 1.0
    %v558 = vmul.f32 %v557, %v473
    %v559 = vand.u32 2147483647, %v473
    %vm560 = vcmp.lt.f32.partialorder %v559, 0.0004427343
    %v561 = vsel %vm560, %v558, %v555
    %v562 = vadd.f32 %v475, 1.0
    %v563 = vlog2.pop %v562
    %v564 = vmul.f32 %v563, 0.6931472
    %v565 = vmul.f32 -0.5, %v475
    %v566 = vadd.f32 %v565, 1.0
    %v567 = vmul.f32 %v566, %v475
    %v568 = vand.u32 2147483647, %v475
    %vm569 = vcmp.lt.f32.partialorder %v568, 0.0004427343
    %v570 = vsel %vm569, %v567, %v564
    %v571 = vadd.f32 %v477, 1.0
    %v572 = vlog2.pop %v571
    %v573 = vmul.f32 %v572, 0.6931472
    %v574 = vmul.f32 -0.5, %v477
    %v575 = vadd.f32 %v574, 1.0
    %v576 = vmul.f32 %v575, %v477
    %v577 = vand.u32 2147483647, %v477
    %vm578 = vcmp.lt.f32.partialorder %v577, 0.0004427343
    %v579 = vsel %vm578, %v576, %v573
    %v580 = vadd.f32 %v479, 1.0
    %v581 = vlog2.pop %v580
    %v582 = vmul.f32 %v581, 0.6931472
    %v583 = vmul.f32 -0.5, %v479
    %v584 = vadd.f32 %v583, 1.0
    %v585 = vmul.f32 %v584, %v479
    %v586 = vand.u32 2147483647, %v479
    %vm587 = vcmp.lt.f32.partialorder %v586, 0.0004427343
    %v588 = vsel %vm587, %v585, %v582
    %v589 = vadd.f32 %v481, 1.0
    %v590 = vlog2.pop %v589
    %v591 = vmul.f32 %v590, 0.6931472
    %v592 = vmul.f32 -0.5, %v481
    %v593 = vadd.f32 %v592, 1.0
    %v594 = vmul.f32 %v593, %v481
    %v595 = vand.u32 2147483647, %v481
    %vm596 = vcmp.lt.f32.partialorder %v595, 0.0004427343
    %v597 = vsel %vm596, %v594, %v591
    %v598 = vadd.f32 %v483, 1.0
    %v599 = vlog2.pop %v598
    %v600 = vmul.f32 %v599, 0.6931472
    %v601 = vmul.f32 -0.5, %v483
    %v602 = vadd.f32 %v601, 1.0
    %v603 = vmul.f32 %v602, %v483
    %v604 = vand.u32 2147483647, %v483
    %vm605 = vcmp.lt.f32.partialorder %v604, 0.0004427343
    %v606 = vsel %vm605, %v603, %v600
    %v607 = vadd.f32 %v485, 1.0
    %v608 = vlog2.pop %v607
    %v609 = vmul.f32 %v608, 0.6931472
    %v610 = vmul.f32 -0.5, %v485
    %v611 = vadd.f32 %v610, 1.0
    %v612 = vmul.f32 %v611, %v485
    %v613 = vand.u32 2147483647, %v485
    %vm614 = vcmp.lt.f32.partialorder %v613, 0.0004427343
    %v615 = vsel %vm614, %v612, %v609
    %v616 = vadd.f32 %v487, 1.0
    %v617 = vlog2.pop %v616
    %v618 = vmul.f32 %v617, 0.6931472
    %v619 = vmul.f32 -0.5, %v487
    %v620 = vadd.f32 %v619, 1.0
    %v621 = vmul.f32 %v620, %v487
    %v622 = vand.u32 2147483647, %v487
    %vm623 = vcmp.lt.f32.partialorder %v622, 0.0004427343
    %v624 = vsel %vm623, %v621, %v618
    %v625 = vadd.f32 %v489, 1.0
    %v626 = vlog2.pop %v625
    %v627 = vmul.f32 %v626, 0.6931472
    %v628 = vmul.f32 -0.5, %v489
    %v629 = vadd.f32 %v628, 1.0
    %v630 = vmul.f32 %v629, %v489
    %v631 = vand.u32 2147483647, %v489
    %vm632 = vcmp.lt.f32.partialorder %v631, 0.0004427343
    %v633 = vsel %vm632, %v630, %v627
    %v634 = vadd.f32 %v378, %v498
    %v635 = vadd.f32 %v379, %v507
    %v636 = vadd.f32 %v380, %v516
    %v637 = vadd.f32 %v381, %v525
    %v638 = vadd.f32 %v382, %v534
    %v639 = vadd.f32 %v383, %v543
    %v640 = vadd.f32 %v384, %v552
    %v641 = vadd.f32 %v385, %v561
    %v642 = vadd.f32 %v386, %v570
    %v643 = vadd.f32 %v387, %v579
    %v644 = vadd.f32 %v388, %v588
    %v645 = vadd.f32 %v389, %v597
    %v646 = vadd.f32 %v390, %v606
    %v647 = vadd.f32 %v391, %v615
    %v648 = vadd.f32 %v392, %v624
    %v649 = vadd.f32 %v393, %v633
    %v650 = vsel %vm394, %v410, %v634
    %v651 = vsel %vm395, %v411, %v635
    %v652 = vsel %vm396, %v412, %v636
    %v653 = vsel %vm397, %v413, %v637
    %v654 = vsel %vm398, %v414, %v638
    %v655 = vsel %vm399, %v415, %v639
    %v656 = vsel %vm400, %v416, %v640
    %v657 = vsel %vm401, %v417, %v641
    %v658 = vsel %vm402, %v418, %v642
    %v659 = vsel %vm403, %v419, %v643
    %v660 = vsel %vm404, %v420, %v644
    %v661 = vsel %vm405, %v421, %v645
    %v662 = vsel %vm406, %v422, %v646
    %v663 = vsel %vm407, %v423, %v647
    %v664 = vsel %vm408, %v424, %v648
    %v665 = vsel %vm409, %v425, %v649
    %v666 = vadd.f32 %v650, 1e-06
    %v667 = vadd.f32 %v651, 1e-06
    %v668 = vadd.f32 %v652, 1e-06
    %v669 = vadd.f32 %v653, 1e-06
    %v670 = vadd.f32 %v654, 1e-06
    %v671 = vadd.f32 %v655, 1e-06
    %v672 = vadd.f32 %v656, 1e-06
    %v673 = vadd.f32 %v657, 1e-06
    %v674 = vadd.f32 %v658, 1e-06
    %v675 = vadd.f32 %v659, 1e-06
    %v676 = vadd.f32 %v660, 1e-06
    %v677 = vadd.f32 %v661, 1e-06
    %v678 = vadd.f32 %v662, 1e-06
    %v679 = vadd.f32 %v663, 1e-06
    %v680 = vadd.f32 %v664, 1e-06
    %v681 = vadd.f32 %v665, 1e-06
    %v682 = vld [vmem:[%s1] sm:$0xff]
    %v683 = vld [vmem:[%s1 + $0x8] sm:$0xff]
    %v684 = vld [vmem:[%s1 + $0x10] sm:$0xff]
    %v685 = vld [vmem:[%s1 + $0x18] sm:$0xff]
    %v686 = vld [vmem:[%s1 + $0x20] sm:$0xff]
    %v687 = vld [vmem:[%s1 + $0x28] sm:$0xff]
    %v688 = vld [vmem:[%s1 + $0x30] sm:$0xff]
    %v689 = vld [vmem:[%s1 + $0x38] sm:$0xff]
    %v690 = vld [vmem:[%s1 + $0x40] sm:$0xff]
    %v691 = vld [vmem:[%s1 + $0x48] sm:$0xff]
    %v692 = vld [vmem:[%s1 + $0x50] sm:$0xff]
    %v693 = vld [vmem:[%s1 + $0x58] sm:$0xff]
    %v694 = vld [vmem:[%s1 + $0x60] sm:$0xff]
    %v695 = vld [vmem:[%s1 + $0x68] sm:$0xff]
    %v696 = vld [vmem:[%s1 + $0x70] sm:$0xff]
    %v697 = vld [vmem:[%s1 + $0x78] sm:$0xff]
    %714 = vrot.lane.b32.xlu0 %v682, 16
    %v715 = vpop.permute.xlu0 %714
    %716 = vrot.lane.b32.xlu0 %v683, 16
    %v717 = vpop.permute.xlu0 %716
    %718 = vrot.lane.b32.xlu0 %v684, 16
    %v719 = vpop.permute.xlu0 %718
    %720 = vrot.lane.b32.xlu0 %v685, 16
    %v721 = vpop.permute.xlu0 %720
    %722 = vrot.lane.b32.xlu0 %v686, 16
    %v723 = vpop.permute.xlu0 %722
    %724 = vrot.lane.b32.xlu0 %v687, 16
    %v725 = vpop.permute.xlu0 %724
    %726 = vrot.lane.b32.xlu0 %v688, 16
    %v727 = vpop.permute.xlu0 %726
    %728 = vrot.lane.b32.xlu0 %v689, 16
    %v729 = vpop.permute.xlu0 %728
    %730 = vrot.lane.b32.xlu0 %v690, 16
    %v731 = vpop.permute.xlu0 %730
    %732 = vrot.lane.b32.xlu0 %v691, 16
    %v733 = vpop.permute.xlu0 %732
    %734 = vrot.lane.b32.xlu0 %v692, 16
    %v735 = vpop.permute.xlu0 %734
    %736 = vrot.lane.b32.xlu0 %v693, 16
    %v737 = vpop.permute.xlu0 %736
    %738 = vrot.lane.b32.xlu0 %v694, 16
    %v739 = vpop.permute.xlu0 %738
    %740 = vrot.lane.b32.xlu0 %v695, 16
    %v741 = vpop.permute.xlu0 %740
    %742 = vrot.lane.b32.xlu0 %v696, 16
    %v743 = vpop.permute.xlu0 %742
    %744 = vrot.lane.b32.xlu0 %v697, 16
    %v745 = vpop.permute.xlu0 %744
    %v762 = vmul.f32 %v666, %v715
    %v763 = vmul.f32 %v667, %v717
    %v764 = vmul.f32 %v668, %v719
    %v765 = vmul.f32 %v669, %v721
    %v766 = vmul.f32 %v670, %v723
    %v767 = vmul.f32 %v671, %v725
    %v768 = vmul.f32 %v672, %v727
    %v769 = vmul.f32 %v673, %v729
    %v770 = vmul.f32 %v674, %v731
    %v771 = vmul.f32 %v675, %v733
    %v772 = vmul.f32 %v676, %v735
    %v773 = vmul.f32 %v677, %v737
    %v774 = vmul.f32 %v678, %v739
    %v775 = vmul.f32 %v679, %v741
    %v776 = vmul.f32 %v680, %v743
    %v777 = vmul.f32 %v681, %v745
    %794 = vrot.lane.b32.xlu0 %v762, 112
    %v795 = vpop.permute.xlu0 %794
    %796 = vrot.lane.b32.xlu0 %v763, 112
    %v797 = vpop.permute.xlu0 %796
    %798 = vrot.lane.b32.xlu0 %v764, 112
    %v799 = vpop.permute.xlu0 %798
    %800 = vrot.lane.b32.xlu0 %v765, 112
    %v801 = vpop.permute.xlu0 %800
    %802 = vrot.lane.b32.xlu0 %v766, 112
    %v803 = vpop.permute.xlu0 %802
    %804 = vrot.lane.b32.xlu0 %v767, 112
    %v805 = vpop.permute.xlu0 %804
    %806 = vrot.lane.b32.xlu0 %v768, 112
    %v807 = vpop.permute.xlu0 %806
    %808 = vrot.lane.b32.xlu0 %v769, 112
    %v809 = vpop.permute.xlu0 %808
    %810 = vrot.lane.b32.xlu0 %v770, 112
    %v811 = vpop.permute.xlu0 %810
    %812 = vrot.lane.b32.xlu0 %v771, 112
    %v813 = vpop.permute.xlu0 %812
    %814 = vrot.lane.b32.xlu0 %v772, 112
    %v815 = vpop.permute.xlu0 %814
    %816 = vrot.lane.b32.xlu0 %v773, 112
    %v817 = vpop.permute.xlu0 %816
    %818 = vrot.lane.b32.xlu0 %v774, 112
    %v819 = vpop.permute.xlu0 %818
    %820 = vrot.lane.b32.xlu0 %v775, 112
    %v821 = vpop.permute.xlu0 %820
    %822 = vrot.lane.b32.xlu0 %v776, 112
    %v823 = vpop.permute.xlu0 %822
    %824 = vrot.lane.b32.xlu0 %v777, 112
    %v825 = vpop.permute.xlu0 %824
    %v842 = vadd.f32 %v339, %v795
    %v843 = vadd.f32 %v341, %v797
    %v844 = vadd.f32 %v344, %v799
    %v845 = vadd.f32 %v346, %v801
    %v846 = vadd.f32 %v349, %v803
    %v847 = vadd.f32 %v351, %v805
    %v848 = vadd.f32 %v354, %v807
    %v849 = vadd.f32 %v356, %v809
    %v850 = vadd.f32 %v359, %v811
    %v851 = vadd.f32 %v361, %v813
    %v852 = vadd.f32 %v364, %v815
    %v853 = vadd.f32 %v366, %v817
    %v854 = vadd.f32 %v369, %v819
    %v855 = vadd.f32 %v371, %v821
    %v856 = vadd.f32 %v374, %v823
    %v857 = vadd.f32 %v376, %v825
    %v858 = vpack.c.bf16 %v843, %v842
    %v859 = vpack.c.bf16 %v845, %v844
    %v860 = vpack.c.bf16 %v847, %v846
    %v861 = vpack.c.bf16 %v849, %v848
    %v862 = vpack.c.bf16 %v851, %v850
    %v863 = vpack.c.bf16 %v853, %v852
    %v864 = vpack.c.bf16 %v855, %v854
    %v865 = vpack.c.bf16 %v857, %v856
    %v866 = vperm.slane %v44, 0
    %v869 = vunpack.c.l.b16 %v31
    %v870 = vunpack.c.l.b16 %v32
    %v871 = vpack.c.b16 %v870, %v869
    %vm873 = vcmask 130048
    %v875 = vsel %vm873, %v858, 0
    %v878 = vsel %vm873, %v859, 0
    %v881 = vsel %vm873, %v860, 0
    %v884 = vsel %vm873, %v861, 0
    %v887 = vsel %vm873, %v862, 0
    %v890 = vsel %vm873, %v863, 0
    %v893 = vsel %vm873, %v864, 0
    %v896 = vsel %vm873, %v865, 0
    %898 = vmatpush.bf16.msra.mxu0 0
    %899 = vmatpush.bf16.msra.mxu0 0
    %900 = vmatpush.bf16.msra.mxu0 0
    %901 = vmatpush.bf16.msra.mxu0 0
    %902 = vmatpush.bf16.msra.mxu0 0
    %903 = vmatpush.bf16.msra.mxu0 0
    %904 = vmatpush.bf16.msra.mxu0 0
    %905 = vmatpush.bf16.msra.mxu0 %v871
    %906 = vmatmul.bf16.gmra.mxu0 %v875
    %v907 = vpop.f32.mrf.mxu0
    %v908 = vadd.f32 %v866, %v907
    %v909 = vpop.f32.mrf.mxu0
    %v910 = vadd.f32 %v866, %v909
    %911 = vmatmul.bf16.gmra.mxu0 %v878
    %v912 = vpop.f32.mrf.mxu0
    %v913 = vadd.f32 %v866, %v912
    %v914 = vpop.f32.mrf.mxu0
    %v915 = vadd.f32 %v866, %v914
    %916 = vmatmul.bf16.gmra.mxu0 %v881
    %v917 = vpop.f32.mrf.mxu0
    %v918 = vadd.f32 %v866, %v917
    %v919 = vpop.f32.mrf.mxu0
    %v920 = vadd.f32 %v866, %v919
    %921 = vmatmul.bf16.gmra.mxu0 %v884
    %v922 = vpop.f32.mrf.mxu0
    %v923 = vadd.f32 %v866, %v922
    %v924 = vpop.f32.mrf.mxu0
    %v925 = vadd.f32 %v866, %v924
    %926 = vmatmul.bf16.gmra.mxu0 %v887
    %v927 = vpop.f32.mrf.mxu0
    %v928 = vadd.f32 %v866, %v927
    %v929 = vpop.f32.mrf.mxu0
    %v930 = vadd.f32 %v866, %v929
    %931 = vmatmul.bf16.gmra.mxu0 %v890
    %v932 = vpop.f32.mrf.mxu0
    %v933 = vadd.f32 %v866, %v932
    %v934 = vpop.f32.mrf.mxu0
    %v935 = vadd.f32 %v866, %v934
    %936 = vmatmul.bf16.gmra.mxu0 %v893
    %v937 = vpop.f32.mrf.mxu0
    %v938 = vadd.f32 %v866, %v937
    %v939 = vpop.f32.mrf.mxu0
    %v940 = vadd.f32 %v866, %v939
    %941 = vmatmul.bf16.gmra.mxu0 %v896
    %v942 = vpop.f32.mrf.mxu0
    %v943 = vadd.f32 %v866, %v942
    %v944 = vpop.f32.mrf.mxu0
    %v945 = vadd.f32 %v866, %v944
    %946 = vdwg.mxu0
    %v947 = vmax.f32 %v908, 0.0
    %v948 = vmax.f32 %v910, 0.0
    %v949 = vmax.f32 %v913, 0.0
    %v950 = vmax.f32 %v915, 0.0
    %v951 = vmax.f32 %v918, 0.0
    %v952 = vmax.f32 %v920, 0.0
    %v953 = vmax.f32 %v923, 0.0
    %v954 = vmax.f32 %v925, 0.0
    %v955 = vmax.f32 %v928, 0.0
    %v956 = vmax.f32 %v930, 0.0
    %v957 = vmax.f32 %v933, 0.0
    %v958 = vmax.f32 %v935, 0.0
    %v959 = vmax.f32 %v938, 0.0
    %v960 = vmax.f32 %v940, 0.0
    %v961 = vmax.f32 %v943, 0.0
    %v962 = vmax.f32 %v945, 0.0
    %v963 = vpack.c.bf16 %v948, %v947
    %v964 = vpack.c.bf16 %v950, %v949
    %v965 = vpack.c.bf16 %v952, %v951
    %v966 = vpack.c.bf16 %v954, %v953
    %v967 = vpack.c.bf16 %v956, %v955
    %v968 = vpack.c.bf16 %v958, %v957
    %v969 = vpack.c.bf16 %v960, %v959
    %v970 = vpack.c.bf16 %v962, %v961
    %v971 = vperm.slane %v45, 0
    %v976 = vunpack.c.l.b16 %v33
    %v977 = vunpack.c.l.b16 %v34
    %v978 = vunpack.c.l.b16 %v35
    %v979 = vunpack.c.l.b16 %v36
    %v980 = vpack.c.b16 %v977, %v976
    %v981 = vpack.c.b16 %v979, %v978
    %v985 = vsel %vm84, %v963, 0
    %v988 = vsel %vm84, %v964, 0
    %v991 = vsel %vm84, %v965, 0
    %v994 = vsel %vm84, %v966, 0
    %v997 = vsel %vm84, %v967, 0
    %v1000 = vsel %vm84, %v968, 0
    %v1003 = vsel %vm84, %v969, 0
    %v1006 = vsel %vm84, %v970, 0
    %1008 = vmatpush.bf16.msra.mxu0 0
    %1009 = vmatpush.bf16.msra.mxu0 0
    %1010 = vmatpush.bf16.msra.mxu0 0
    %1011 = vmatpush.bf16.msra.mxu0 0
    %1012 = vmatpush.bf16.msra.mxu0 0
    %1013 = vmatpush.bf16.msra.mxu0 0
    %1014 = vmatpush.bf16.msra.mxu0 %v981
    %1015 = vmatpush.bf16.msra.mxu0 %v980
    %1016 = vmatmul.bf16.gmra.mxu0 %v985
    %v1017 = vpop.f32.mrf.mxu0
    %v1018 = vadd.f32 %v971, %v1017
    %v1019 = vpop.f32.mrf.mxu0
    %v1020 = vadd.f32 %v971, %v1019
    %1021 = vmatmul.bf16.gmra.mxu0 %v988
    %v1022 = vpop.f32.mrf.mxu0
    %v1023 = vadd.f32 %v971, %v1022
    %v1024 = vpop.f32.mrf.mxu0
    %v1025 = vadd.f32 %v971, %v1024
    %1026 = vmatmul.bf16.gmra.mxu0 %v991
    %v1027 = vpop.f32.mrf.mxu0
    %v1028 = vadd.f32 %v971, %v1027
    %v1029 = vpop.f32.mrf.mxu0
    %v1030 = vadd.f32 %v971, %v1029
    %1031 = vmatmul.bf16.gmra.mxu0 %v994
    %v1032 = vpop.f32.mrf.mxu0
    %v1033 = vadd.f32 %v971, %v1032
    %v1034 = vpop.f32.mrf.mxu0
    %v1035 = vadd.f32 %v971, %v1034
    %1036 = vmatmul.bf16.gmra.mxu0 %v997
    %v1037 = vpop.f32.mrf.mxu0
    %v1038 = vadd.f32 %v971, %v1037
    %v1039 = vpop.f32.mrf.mxu0
    %v1040 = vadd.f32 %v971, %v1039
    %1041 = vmatmul.bf16.gmra.mxu0 %v1000
    %v1042 = vpop.f32.mrf.mxu0
    %v1043 = vadd.f32 %v971, %v1042
    %v1044 = vpop.f32.mrf.mxu0
    %v1045 = vadd.f32 %v971, %v1044
    %1046 = vmatmul.bf16.gmra.mxu0 %v1003
    %v1047 = vpop.f32.mrf.mxu0
    %v1048 = vadd.f32 %v971, %v1047
    %v1049 = vpop.f32.mrf.mxu0
    %v1050 = vadd.f32 %v971, %v1049
    %1051 = vmatmul.bf16.gmra.mxu0 %v1006
    %v1052 = vpop.f32.mrf.mxu0
    %v1053 = vadd.f32 %v971, %v1052
    %v1054 = vpop.f32.mrf.mxu0
    %v1055 = vadd.f32 %v971, %v1054
    %1056 = vdwg.mxu0
    %v1057 = vmax.f32 %v1018, 0.0
    %v1058 = vmax.f32 %v1020, 0.0
    %v1059 = vmax.f32 %v1023, 0.0
    %v1060 = vmax.f32 %v1025, 0.0
    %v1061 = vmax.f32 %v1028, 0.0
    %v1062 = vmax.f32 %v1030, 0.0
    %v1063 = vmax.f32 %v1033, 0.0
    %v1064 = vmax.f32 %v1035, 0.0
    %v1065 = vmax.f32 %v1038, 0.0
    %v1066 = vmax.f32 %v1040, 0.0
    %v1067 = vmax.f32 %v1043, 0.0
    %v1068 = vmax.f32 %v1045, 0.0
    %v1069 = vmax.f32 %v1048, 0.0
    %v1070 = vmax.f32 %v1050, 0.0
    %v1071 = vmax.f32 %v1053, 0.0
    %v1072 = vmax.f32 %v1055, 0.0
    %v1073 = vpack.c.bf16 %v1058, %v1057
    %v1074 = vpack.c.bf16 %v1060, %v1059
    %v1075 = vpack.c.bf16 %v1062, %v1061
    %v1076 = vpack.c.bf16 %v1064, %v1063
    %v1077 = vpack.c.bf16 %v1066, %v1065
    %v1078 = vpack.c.bf16 %v1068, %v1067
    %v1079 = vpack.c.bf16 %v1070, %v1069
    %v1080 = vpack.c.bf16 %v1072, %v1071
    %v1081 = vperm.slane %v46, 0
    %v1086 = vunpack.c.l.b16 %v37
    %v1087 = vunpack.c.l.b16 %v38
    %v1088 = vunpack.c.l.b16 %v39
    %v1089 = vunpack.c.l.b16 %v40
    %v1090 = vpack.c.b16 %v1087, %v1086
    %v1091 = vpack.c.b16 %v1089, %v1088
    %v1095 = vsel %vm84, %v1073, 0
    %v1098 = vsel %vm84, %v1074, 0
    %v1101 = vsel %vm84, %v1075, 0
    %v1104 = vsel %vm84, %v1076, 0
    %v1107 = vsel %vm84, %v1077, 0
    %v1110 = vsel %vm84, %v1078, 0
    %v1113 = vsel %vm84, %v1079, 0
    %v1116 = vsel %vm84, %v1080, 0
    %1118 = vmatpush.bf16.msra.mxu0 0
    %1119 = vmatpush.bf16.msra.mxu0 0
    %1120 = vmatpush.bf16.msra.mxu0 0
    %1121 = vmatpush.bf16.msra.mxu0 0
    %1122 = vmatpush.bf16.msra.mxu0 0
    %1123 = vmatpush.bf16.msra.mxu0 0
    %1124 = vmatpush.bf16.msra.mxu0 %v1091
    %1125 = vmatpush.bf16.msra.mxu0 %v1090
    %1126 = vmatmul.bf16.gmra.mxu0 %v1095
    %v1127 = vpop.f32.mrf.mxu0
    %v1128 = vadd.f32 %v1081, %v1127
    %v1129 = vpop.f32.mrf.mxu0
    %v1130 = vadd.f32 %v1081, %v1129
    %1131 = vmatmul.bf16.gmra.mxu0 %v1098
    %v1132 = vpop.f32.mrf.mxu0
    %v1133 = vadd.f32 %v1081, %v1132
    %v1134 = vpop.f32.mrf.mxu0
    %v1135 = vadd.f32 %v1081, %v1134
    %1136 = vmatmul.bf16.gmra.mxu0 %v1101
    %v1137 = vpop.f32.mrf.mxu0
    %v1138 = vadd.f32 %v1081, %v1137
    %v1139 = vpop.f32.mrf.mxu0
    %v1140 = vadd.f32 %v1081, %v1139
    %1141 = vmatmul.bf16.gmra.mxu0 %v1104
    %v1142 = vpop.f32.mrf.mxu0
    %v1143 = vadd.f32 %v1081, %v1142
    %v1144 = vpop.f32.mrf.mxu0
    %v1145 = vadd.f32 %v1081, %v1144
    %1146 = vmatmul.bf16.gmra.mxu0 %v1107
    %v1147 = vpop.f32.mrf.mxu0
    %v1148 = vadd.f32 %v1081, %v1147
    %v1149 = vpop.f32.mrf.mxu0
    %v1150 = vadd.f32 %v1081, %v1149
    %1151 = vmatmul.bf16.gmra.mxu0 %v1110
    %v1152 = vpop.f32.mrf.mxu0
    %v1153 = vadd.f32 %v1081, %v1152
    %v1154 = vpop.f32.mrf.mxu0
    %v1155 = vadd.f32 %v1081, %v1154
    %1156 = vmatmul.bf16.gmra.mxu0 %v1113
    %v1157 = vpop.f32.mrf.mxu0
    %v1158 = vadd.f32 %v1081, %v1157
    %v1159 = vpop.f32.mrf.mxu0
    %v1160 = vadd.f32 %v1081, %v1159
    %1161 = vmatmul.bf16.gmra.mxu0 %v1116
    %v1162 = vpop.f32.mrf.mxu0
    %v1163 = vadd.f32 %v1081, %v1162
    %v1164 = vpop.f32.mrf.mxu0
    %v1165 = vadd.f32 %v1081, %v1164
    %1166 = vdwg.mxu0
    %v1167 = vsel %vm84, %v1128, -inf
    %1168 = vmax.xlane.f32.xlu0 %v1167
    %v1169 = vpop.xlane.xlu0 %1168
    %v1170 = vsel %vm84, %v1130, -inf
    %1171 = vmax.xlane.f32.xlu0 %v1170
    %v1172 = vpop.xlane.xlu0 %1171
    %v1173 = vsel %vm84, %v1133, -inf
    %1174 = vmax.xlane.f32.xlu0 %v1173
    %v1175 = vpop.xlane.xlu0 %1174
    %v1176 = vsel %vm84, %v1135, -inf
    %1177 = vmax.xlane.f32.xlu0 %v1176
    %v1178 = vpop.xlane.xlu0 %1177
    %v1179 = vsel %vm84, %v1138, -inf
    %1180 = vmax.xlane.f32.xlu0 %v1179
    %v1181 = vpop.xlane.xlu0 %1180
    %v1182 = vsel %vm84, %v1140, -inf
    %1183 = vmax.xlane.f32.xlu0 %v1182
    %v1184 = vpop.xlane.xlu0 %1183
    %v1185 = vsel %vm84, %v1143, -inf
    %1186 = vmax.xlane.f32.xlu0 %v1185
    %v1187 = vpop.xlane.xlu0 %1186
    %v1188 = vsel %vm84, %v1145, -inf
    %1189 = vmax.xlane.f32.xlu0 %v1188
    %v1190 = vpop.xlane.xlu0 %1189
    %v1191 = vsel %vm84, %v1148, -inf
    %1192 = vmax.xlane.f32.xlu0 %v1191
    %v1193 = vpop.xlane.xlu0 %1192
    %v1194 = vsel %vm84, %v1150, -inf
    %1195 = vmax.xlane.f32.xlu0 %v1194
    %v1196 = vpop.xlane.xlu0 %1195
    %v1197 = vsel %vm84, %v1153, -inf
    %1198 = vmax.xlane.f32.xlu0 %v1197
    %v1199 = vpop.xlane.xlu0 %1198
    %v1200 = vsel %vm84, %v1155, -inf
    %1201 = vmax.xlane.f32.xlu0 %v1200
    %v1202 = vpop.xlane.xlu0 %1201
    %v1203 = vsel %vm84, %v1158, -inf
    %1204 = vmax.xlane.f32.xlu0 %v1203
    %v1205 = vpop.xlane.xlu0 %1204
    %v1206 = vsel %vm84, %v1160, -inf
    %1207 = vmax.xlane.f32.xlu0 %v1206
    %v1208 = vpop.xlane.xlu0 %1207
    %v1209 = vsel %vm84, %v1163, -inf
    %1210 = vmax.xlane.f32.xlu0 %v1209
    %v1211 = vpop.xlane.xlu0 %1210
    %v1212 = vsel %vm84, %v1165, -inf
    %1213 = vmax.xlane.f32.xlu0 %v1212
    %v1214 = vpop.xlane.xlu0 %1213
    %v1215 = vsub.f32 %v1128, %v1169
    %v1216 = vsub.f32 %v1130, %v1172
    %v1217 = vsub.f32 %v1133, %v1175
    %v1218 = vsub.f32 %v1135, %v1178
    %v1219 = vsub.f32 %v1138, %v1181
    %v1220 = vsub.f32 %v1140, %v1184
    %v1221 = vsub.f32 %v1143, %v1187
    %v1222 = vsub.f32 %v1145, %v1190
    %v1223 = vsub.f32 %v1148, %v1193
    %v1224 = vsub.f32 %v1150, %v1196
    %v1225 = vsub.f32 %v1153, %v1199
    %v1226 = vsub.f32 %v1155, %v1202
    %v1227 = vsub.f32 %v1158, %v1205
    %v1228 = vsub.f32 %v1160, %v1208
    %v1229 = vsub.f32 %v1163, %v1211
    %v1230 = vsub.f32 %v1165, %v1214
    %v1231 = vmul.f32 %v1215, 1.442695
    %v1232 = vpow.pop %v1231
    %v1233 = vmul.f32 %v1216, 1.442695
    %v1234 = vpow.pop %v1233
    %v1235 = vmul.f32 %v1217, 1.442695
    %v1236 = vpow.pop %v1235
    %v1237 = vmul.f32 %v1218, 1.442695
    %v1238 = vpow.pop %v1237
    %v1239 = vmul.f32 %v1219, 1.442695
    %v1240 = vpow.pop %v1239
    %v1241 = vmul.f32 %v1220, 1.442695
    %v1242 = vpow.pop %v1241
    %v1243 = vmul.f32 %v1221, 1.442695
    %v1244 = vpow.pop %v1243
    %v1245 = vmul.f32 %v1222, 1.442695
    %v1246 = vpow.pop %v1245
    %v1247 = vmul.f32 %v1223, 1.442695
    %v1248 = vpow.pop %v1247
    %v1249 = vmul.f32 %v1224, 1.442695
    %v1250 = vpow.pop %v1249
    %v1251 = vmul.f32 %v1225, 1.442695
    %v1252 = vpow.pop %v1251
    %v1253 = vmul.f32 %v1226, 1.442695
    %v1254 = vpow.pop %v1253
    %v1255 = vmul.f32 %v1227, 1.442695
    %v1256 = vpow.pop %v1255
    %v1257 = vmul.f32 %v1228, 1.442695
    %v1258 = vpow.pop %v1257
    %v1259 = vmul.f32 %v1229, 1.442695
    %v1260 = vpow.pop %v1259
    %v1261 = vmul.f32 %v1230, 1.442695
    %v1262 = vpow.pop %v1261
    %v1263 = vsel %vm84, %v1232, 0.0
    %1264 = vadd.xlane.f32.xlu0 %v1263
    %v1265 = vpop.xlane.xlu0 %1264
    %v1266 = vsel %vm84, %v1234, 0.0
    %1267 = vadd.xlane.f32.xlu0 %v1266
    %v1268 = vpop.xlane.xlu0 %1267
    %v1269 = vsel %vm84, %v1236, 0.0
    %1270 = vadd.xlane.f32.xlu0 %v1269
    %v1271 = vpop.xlane.xlu0 %1270
    %v1272 = vsel %vm84, %v1238, 0.0
    %1273 = vadd.xlane.f32.xlu0 %v1272
    %v1274 = vpop.xlane.xlu0 %1273
    %v1275 = vsel %vm84, %v1240, 0.0
    %1276 = vadd.xlane.f32.xlu0 %v1275
    %v1277 = vpop.xlane.xlu0 %1276
    %v1278 = vsel %vm84, %v1242, 0.0
    %1279 = vadd.xlane.f32.xlu0 %v1278
    %v1280 = vpop.xlane.xlu0 %1279
    %v1281 = vsel %vm84, %v1244, 0.0
    %1282 = vadd.xlane.f32.xlu0 %v1281
    %v1283 = vpop.xlane.xlu0 %1282
    %v1284 = vsel %vm84, %v1246, 0.0
    %1285 = vadd.xlane.f32.xlu0 %v1284
    %v1286 = vpop.xlane.xlu0 %1285
    %v1287 = vsel %vm84, %v1248, 0.0
    %1288 = vadd.xlane.f32.xlu0 %v1287
    %v1289 = vpop.xlane.xlu0 %1288
    %v1290 = vsel %vm84, %v1250, 0.0
    %1291 = vadd.xlane.f32.xlu0 %v1290
    %v1292 = vpop.xlane.xlu0 %1291
    %v1293 = vsel %vm84, %v1252, 0.0
    %1294 = vadd.xlane.f32.xlu0 %v1293
    %v1295 = vpop.xlane.xlu0 %1294
    %v1296 = vsel %vm84, %v1254, 0.0
    %1297 = vadd.xlane.f32.xlu0 %v1296
    %v1298 = vpop.xlane.xlu0 %1297
    %v1299 = vsel %vm84, %v1256, 0.0
    %1300 = vadd.xlane.f32.xlu0 %v1299
    %v1301 = vpop.xlane.xlu0 %1300
    %v1302 = vsel %vm84, %v1258, 0.0
    %1303 = vadd.xlane.f32.xlu0 %v1302
    %v1304 = vpop.xlane.xlu0 %1303
    %v1305 = vsel %vm84, %v1260, 0.0
    %1306 = vadd.xlane.f32.xlu0 %v1305
    %v1307 = vpop.xlane.xlu0 %1306
    %v1308 = vsel %vm84, %v1262, 0.0
    %1309 = vadd.xlane.f32.xlu0 %v1308
    %v1310 = vpop.xlane.xlu0 %1309
    %v1311 = vrcp.pop %v1265
    %v1312 = vmul.f32 %v1265, %v1311
    %v1313 = vsub.f32 1.0, %v1312
    %v1314 = vmul.f32 %v1311, %v1313
    %v1315 = vadd.f32 %v1311, %v1314
    %vm1316 = vweird.f32 %v1265
    %vm1317 = vweird.f32 %v1311
    %vm1318 = vmor %vm1316, %vm1317
    %v1319 = vsel %vm1318, %v1311, %v1315
    %v1320 = vand.u32 2147483647, %v1265
    %vm1321 = vcmp.eq.f32.partialorder %v1320, 8.507059e+37
    %v1322 = vand.u32 %v1265, 2147483648
    %v1323 = vor.u32 1.1754944e-38, %v1322
    %v1324 = vsel %vm1321, %v1323, %v1319
    %v1325 = vmul.f32 %v1232, %v1324
    %v1326 = vrcp.pop %v1268
    %v1327 = vmul.f32 %v1268, %v1326
    %v1328 = vsub.f32 1.0, %v1327
    %v1329 = vmul.f32 %v1326, %v1328
    %v1330 = vadd.f32 %v1326, %v1329
    %vm1331 = vweird.f32 %v1268
    %vm1332 = vweird.f32 %v1326
    %vm1333 = vmor %vm1331, %vm1332
    %v1334 = vsel %vm1333, %v1326, %v1330
    %v1335 = vand.u32 2147483647, %v1268
    %vm1336 = vcmp.eq.f32.partialorder %v1335, 8.507059e+37
    %v1337 = vand.u32 %v1268, 2147483648
    %v1338 = vor.u32 1.1754944e-38, %v1337
    %v1339 = vsel %vm1336, %v1338, %v1334
    %v1340 = vmul.f32 %v1234, %v1339
    %v1341 = vrcp.pop %v1271
    %v1342 = vmul.f32 %v1271, %v1341
    %v1343 = vsub.f32 1.0, %v1342
    %v1344 = vmul.f32 %v1341, %v1343
    %v1345 = vadd.f32 %v1341, %v1344
    %vm1346 = vweird.f32 %v1271
    %vm1347 = vweird.f32 %v1341
    %vm1348 = vmor %vm1346, %vm1347
    %v1349 = vsel %vm1348, %v1341, %v1345
    %v1350 = vand.u32 2147483647, %v1271
    %vm1351 = vcmp.eq.f32.partialorder %v1350, 8.507059e+37
    %v1352 = vand.u32 %v1271, 2147483648
    %v1353 = vor.u32 1.1754944e-38, %v1352
    %v1354 = vsel %vm1351, %v1353, %v1349
    %v1355 = vmul.f32 %v1236, %v1354
    %v1356 = vrcp.pop %v1274
    %v1357 = vmul.f32 %v1274, %v1356
    %v1358 = vsub.f32 1.0, %v1357
    %v1359 = vmul.f32 %v1356, %v1358
    %v1360 = vadd.f32 %v1356, %v1359
    %vm1361 = vweird.f32 %v1274
    %vm1362 = vweird.f32 %v1356
    %vm1363 = vmor %vm1361, %vm1362
    %v1364 = vsel %vm1363, %v1356, %v1360
    %v1365 = vand.u32 2147483647, %v1274
    %vm1366 = vcmp.eq.f32.partialorder %v1365, 8.507059e+37
    %v1367 = vand.u32 %v1274, 2147483648
    %v1368 = vor.u32 1.1754944e-38, %v1367
    %v1369 = vsel %vm1366, %v1368, %v1364
    %v1370 = vmul.f32 %v1238, %v1369
    %v1371 = vrcp.pop %v1277
    %v1372 = vmul.f32 %v1277, %v1371
    %v1373 = vsub.f32 1.0, %v1372
    %v1374 = vmul.f32 %v1371, %v1373
    %v1375 = vadd.f32 %v1371, %v1374
    %vm1376 = vweird.f32 %v1277
    %vm1377 = vweird.f32 %v1371
    %vm1378 = vmor %vm1376, %vm1377
    %v1379 = vsel %vm1378, %v1371, %v1375
    %v1380 = vand.u32 2147483647, %v1277
    %vm1381 = vcmp.eq.f32.partialorder %v1380, 8.507059e+37
    %v1382 = vand.u32 %v1277, 2147483648
    %v1383 = vor.u32 1.1754944e-38, %v1382
    %v1384 = vsel %vm1381, %v1383, %v1379
    %v1385 = vmul.f32 %v1240, %v1384
    %v1386 = vrcp.pop %v1280
    %v1387 = vmul.f32 %v1280, %v1386
    %v1388 = vsub.f32 1.0, %v1387
    %v1389 = vmul.f32 %v1386, %v1388
    %v1390 = vadd.f32 %v1386, %v1389
    %vm1391 = vweird.f32 %v1280
    %vm1392 = vweird.f32 %v1386
    %vm1393 = vmor %vm1391, %vm1392
    %v1394 = vsel %vm1393, %v1386, %v1390
    %v1395 = vand.u32 2147483647, %v1280
    %vm1396 = vcmp.eq.f32.partialorder %v1395, 8.507059e+37
    %v1397 = vand.u32 %v1280, 2147483648
    %v1398 = vor.u32 1.1754944e-38, %v1397
    %v1399 = vsel %vm1396, %v1398, %v1394
    %v1400 = vmul.f32 %v1242, %v1399
    %v1401 = vrcp.pop %v1283
    %v1402 = vmul.f32 %v1283, %v1401
    %v1403 = vsub.f32 1.0, %v1402
    %v1404 = vmul.f32 %v1401, %v1403
    %v1405 = vadd.f32 %v1401, %v1404
    %vm1406 = vweird.f32 %v1283
    %vm1407 = vweird.f32 %v1401
    %vm1408 = vmor %vm1406, %vm1407
    %v1409 = vsel %vm1408, %v1401, %v1405
    %v1410 = vand.u32 2147483647, %v1283
    %vm1411 = vcmp.eq.f32.partialorder %v1410, 8.507059e+37
    %v1412 = vand.u32 %v1283, 2147483648
    %v1413 = vor.u32 1.1754944e-38, %v1412
    %v1414 = vsel %vm1411, %v1413, %v1409
    %v1415 = vmul.f32 %v1244, %v1414
    %v1416 = vrcp.pop %v1286
    %v1417 = vmul.f32 %v1286, %v1416
    %v1418 = vsub.f32 1.0, %v1417
    %v1419 = vmul.f32 %v1416, %v1418
    %v1420 = vadd.f32 %v1416, %v1419
    %vm1421 = vweird.f32 %v1286
    %vm1422 = vweird.f32 %v1416
    %vm1423 = vmor %vm1421, %vm1422
    %v1424 = vsel %vm1423, %v1416, %v1420
    %v1425 = vand.u32 2147483647, %v1286
    %vm1426 = vcmp.eq.f32.partialorder %v1425, 8.507059e+37
    %v1427 = vand.u32 %v1286, 2147483648
    %v1428 = vor.u32 1.1754944e-38, %v1427
    %v1429 = vsel %vm1426, %v1428, %v1424
    %v1430 = vmul.f32 %v1246, %v1429
    %v1431 = vrcp.pop %v1289
    %v1432 = vmul.f32 %v1289, %v1431
    %v1433 = vsub.f32 1.0, %v1432
    %v1434 = vmul.f32 %v1431, %v1433
    %v1435 = vadd.f32 %v1431, %v1434
    %vm1436 = vweird.f32 %v1289
    %vm1437 = vweird.f32 %v1431
    %vm1438 = vmor %vm1436, %vm1437
    %v1439 = vsel %vm1438, %v1431, %v1435
    %v1440 = vand.u32 2147483647, %v1289
    %vm1441 = vcmp.eq.f32.partialorder %v1440, 8.507059e+37
    %v1442 = vand.u32 %v1289, 2147483648
    %v1443 = vor.u32 1.1754944e-38, %v1442
    %v1444 = vsel %vm1441, %v1443, %v1439
    %v1445 = vmul.f32 %v1248, %v1444
    %v1446 = vrcp.pop %v1292
    %v1447 = vmul.f32 %v1292, %v1446
    %v1448 = vsub.f32 1.0, %v1447
    %v1449 = vmul.f32 %v1446, %v1448
    %v1450 = vadd.f32 %v1446, %v1449
    %vm1451 = vweird.f32 %v1292
    %vm1452 = vweird.f32 %v1446
    %vm1453 = vmor %vm1451, %vm1452
    %v1454 = vsel %vm1453, %v1446, %v1450
    %v1455 = vand.u32 2147483647, %v1292
    %vm1456 = vcmp.eq.f32.partialorder %v1455, 8.507059e+37
    %v1457 = vand.u32 %v1292, 2147483648
    %v1458 = vor.u32 1.1754944e-38, %v1457
    %v1459 = vsel %vm1456, %v1458, %v1454
    %v1460 = vmul.f32 %v1250, %v1459
    %v1461 = vrcp.pop %v1295
    %v1462 = vmul.f32 %v1295, %v1461
    %v1463 = vsub.f32 1.0, %v1462
    %v1464 = vmul.f32 %v1461, %v1463
    %v1465 = vadd.f32 %v1461, %v1464
    %vm1466 = vweird.f32 %v1295
    %vm1467 = vweird.f32 %v1461
    %vm1468 = vmor %vm1466, %vm1467
    %v1469 = vsel %vm1468, %v1461, %v1465
    %v1470 = vand.u32 2147483647, %v1295
    %vm1471 = vcmp.eq.f32.partialorder %v1470, 8.507059e+37
    %v1472 = vand.u32 %v1295, 2147483648
    %v1473 = vor.u32 1.1754944e-38, %v1472
    %v1474 = vsel %vm1471, %v1473, %v1469
    %v1475 = vmul.f32 %v1252, %v1474
    %v1476 = vrcp.pop %v1298
    %v1477 = vmul.f32 %v1298, %v1476
    %v1478 = vsub.f32 1.0, %v1477
    %v1479 = vmul.f32 %v1476, %v1478
    %v1480 = vadd.f32 %v1476, %v1479
    %vm1481 = vweird.f32 %v1298
    %vm1482 = vweird.f32 %v1476
    %vm1483 = vmor %vm1481, %vm1482
    %v1484 = vsel %vm1483, %v1476, %v1480
    %v1485 = vand.u32 2147483647, %v1298
    %vm1486 = vcmp.eq.f32.partialorder %v1485, 8.507059e+37
    %v1487 = vand.u32 %v1298, 2147483648
    %v1488 = vor.u32 1.1754944e-38, %v1487
    %v1489 = vsel %vm1486, %v1488, %v1484
    %v1490 = vmul.f32 %v1254, %v1489
    %v1491 = vrcp.pop %v1301
    %v1492 = vmul.f32 %v1301, %v1491
    %v1493 = vsub.f32 1.0, %v1492
    %v1494 = vmul.f32 %v1491, %v1493
    %v1495 = vadd.f32 %v1491, %v1494
    %vm1496 = vweird.f32 %v1301
    %vm1497 = vweird.f32 %v1491
    %vm1498 = vmor %vm1496, %vm1497
    %v1499 = vsel %vm1498, %v1491, %v1495
    %v1500 = vand.u32 2147483647, %v1301
    %vm1501 = vcmp.eq.f32.partialorder %v1500, 8.507059e+37
    %v1502 = vand.u32 %v1301, 2147483648
    %v1503 = vor.u32 1.1754944e-38, %v1502
    %v1504 = vsel %vm1501, %v1503, %v1499
    %v1505 = vmul.f32 %v1256, %v1504
    %v1506 = vrcp.pop %v1304
    %v1507 = vmul.f32 %v1304, %v1506
    %v1508 = vsub.f32 1.0, %v1507
    %v1509 = vmul.f32 %v1506, %v1508
    %v1510 = vadd.f32 %v1506, %v1509
    %vm1511 = vweird.f32 %v1304
    %vm1512 = vweird.f32 %v1506
    %vm1513 = vmor %vm1511, %vm1512
    %v1514 = vsel %vm1513, %v1506, %v1510
    %v1515 = vand.u32 2147483647, %v1304
    %vm1516 = vcmp.eq.f32.partialorder %v1515, 8.507059e+37
    %v1517 = vand.u32 %v1304, 2147483648
    %v1518 = vor.u32 1.1754944e-38, %v1517
    %v1519 = vsel %vm1516, %v1518, %v1514
    %v1520 = vmul.f32 %v1258, %v1519
    %v1521 = vrcp.pop %v1307
    %v1522 = vmul.f32 %v1307, %v1521
    %v1523 = vsub.f32 1.0, %v1522
    %v1524 = vmul.f32 %v1521, %v1523
    %v1525 = vadd.f32 %v1521, %v1524
    %vm1526 = vweird.f32 %v1307
    %vm1527 = vweird.f32 %v1521
    %vm1528 = vmor %vm1526, %vm1527
    %v1529 = vsel %vm1528, %v1521, %v1525
    %v1530 = vand.u32 2147483647, %v1307
    %vm1531 = vcmp.eq.f32.partialorder %v1530, 8.507059e+37
    %v1532 = vand.u32 %v1307, 2147483648
    %v1533 = vor.u32 1.1754944e-38, %v1532
    %v1534 = vsel %vm1531, %v1533, %v1529
    %v1535 = vmul.f32 %v1260, %v1534
    %v1536 = vrcp.pop %v1310
    %v1537 = vmul.f32 %v1310, %v1536
    %v1538 = vsub.f32 1.0, %v1537
    %v1539 = vmul.f32 %v1536, %v1538
    %v1540 = vadd.f32 %v1536, %v1539
    %vm1541 = vweird.f32 %v1310
    %vm1542 = vweird.f32 %v1536
    %vm1543 = vmor %vm1541, %vm1542
    %v1544 = vsel %vm1543, %v1536, %v1540
    %v1545 = vand.u32 2147483647, %v1310
    %vm1546 = vcmp.eq.f32.partialorder %v1545, 8.507059e+37
    %v1547 = vand.u32 %v1310, 2147483648
    %v1548 = vor.u32 1.1754944e-38, %v1547
    %v1549 = vsel %vm1546, %v1548, %v1544
    %v1550 = vmul.f32 %v1262, %v1549
    %1551 = vmatpush.bf16.xpose.msra.mxu0 %v896
    %1552 = vmatpush.bf16.xpose.msra.mxu0 %v893
    %1553 = vmatpush.bf16.xpose.msra.mxu0 %v890
    %1554 = vmatpush.bf16.xpose.msra.mxu0 %v887
    %1555 = vmatpush.bf16.xpose.msra.mxu0 %v884
    %1556 = vmatpush.bf16.xpose.msra.mxu0 %v881
    %1557 = vmatpush.bf16.xpose.msra.mxu0 %v878
    %1558 = vmatpush.bf16.xpose.msra.mxu0 %v875
    %1559 = vmatmul.bf16.gmra.mxu0 %v875
    %v1560 = vpop.f32.mrf.mxu0
    %v1561 = vadd.f32 0.0, %v1560
    %v1562 = vpop.f32.mrf.mxu0
    %v1563 = vadd.f32 0.0, %v1562
    %1564 = vmatmul.bf16.gmra.mxu0 %v878
    %v1565 = vpop.f32.mrf.mxu0
    %v1566 = vadd.f32 0.0, %v1565
    %v1567 = vpop.f32.mrf.mxu0
    %v1568 = vadd.f32 0.0, %v1567
    %1569 = vmatmul.bf16.gmra.mxu0 %v881
    %v1570 = vpop.f32.mrf.mxu0
    %v1571 = vadd.f32 0.0, %v1570
    %v1572 = vpop.f32.mrf.mxu0
    %v1573 = vadd.f32 0.0, %v1572
    %1574 = vmatmul.bf16.gmra.mxu0 %v884
    %v1575 = vpop.f32.mrf.mxu0
    %v1576 = vadd.f32 0.0, %v1575
    %v1577 = vpop.f32.mrf.mxu0
    %v1578 = vadd.f32 0.0, %v1577
    %1579 = vmatmul.bf16.gmra.mxu0 %v887
    %v1580 = vpop.f32.mrf.mxu0
    %v1581 = vadd.f32 0.0, %v1580
    %v1582 = vpop.f32.mrf.mxu0
    %v1583 = vadd.f32 0.0, %v1582
    %1584 = vmatmul.bf16.gmra.mxu0 %v890
    %v1585 = vpop.f32.mrf.mxu0
    %v1586 = vadd.f32 0.0, %v1585
    %v1587 = vpop.f32.mrf.mxu0
    %v1588 = vadd.f32 0.0, %v1587
    %1589 = vmatmul.bf16.gmra.mxu0 %v893
    %v1590 = vpop.f32.mrf.mxu0
    %v1591 = vadd.f32 0.0, %v1590
    %v1592 = vpop.f32.mrf.mxu0
    %v1593 = vadd.f32 0.0, %v1592
    %1594 = vmatmul.bf16.gmra.mxu0 %v896
    %v1595 = vpop.f32.mrf.mxu0
    %v1596 = vadd.f32 0.0, %v1595
    %v1597 = vpop.f32.mrf.mxu0
    %v1598 = vadd.f32 0.0, %v1597
    %1599 = vdwg.mxu0
    %v1600 = vxor.u32 %v1561, 2147483648
    %v1601 = vxor.u32 %v1563, 2147483648
    %v1602 = vxor.u32 %v1566, 2147483648
    %v1603 = vxor.u32 %v1568, 2147483648
    %v1604 = vxor.u32 %v1571, 2147483648
    %v1605 = vxor.u32 %v1573, 2147483648
    %v1606 = vxor.u32 %v1576, 2147483648
    %v1607 = vxor.u32 %v1578, 2147483648
    %v1608 = vxor.u32 %v1581, 2147483648
    %v1609 = vxor.u32 %v1583, 2147483648
    %v1610 = vxor.u32 %v1586, 2147483648
    %v1611 = vxor.u32 %v1588, 2147483648
    %v1612 = vxor.u32 %v1591, 2147483648
    %v1613 = vxor.u32 %v1593, 2147483648
    %v1614 = vxor.u32 %v1596, 2147483648
    %v1615 = vxor.u32 %v1598, 2147483648
    %v1616 = vmul.f32 %v1600, 1.442695
    %v1617 = vpow.pop %v1616
    %v1618 = vmul.f32 %v1601, 1.442695
    %v1619 = vpow.pop %v1618
    %v1620 = vmul.f32 %v1602, 1.442695
    %v1621 = vpow.pop %v1620
    %v1622 = vmul.f32 %v1603, 1.442695
    %v1623 = vpow.pop %v1622
    %v1624 = vmul.f32 %v1604, 1.442695
    %v1625 = vpow.pop %v1624
    %v1626 = vmul.f32 %v1605, 1.442695
    %v1627 = vpow.pop %v1626
    %v1628 = vmul.f32 %v1606, 1.442695
    %v1629 = vpow.pop %v1628
    %v1630 = vmul.f32 %v1607, 1.442695
    %v1631 = vpow.pop %v1630
    %v1632 = vmul.f32 %v1608, 1.442695
    %v1633 = vpow.pop %v1632
    %v1634 = vmul.f32 %v1609, 1.442695
    %v1635 = vpow.pop %v1634
    %v1636 = vmul.f32 %v1610, 1.442695
    %v1637 = vpow.pop %v1636
    %v1638 = vmul.f32 %v1611, 1.442695
    %v1639 = vpow.pop %v1638
    %v1640 = vmul.f32 %v1612, 1.442695
    %v1641 = vpow.pop %v1640
    %v1642 = vmul.f32 %v1613, 1.442695
    %v1643 = vpow.pop %v1642
    %v1644 = vmul.f32 %v1614, 1.442695
    %v1645 = vpow.pop %v1644
    %v1646 = vmul.f32 %v1615, 1.442695
    %v1647 = vpow.pop %v1646
    %v1648 = vadd.f32 %v1617, 1.0
    %v1649 = vadd.f32 %v1619, 1.0
    %v1650 = vadd.f32 %v1621, 1.0
    %v1651 = vadd.f32 %v1623, 1.0
    %v1652 = vadd.f32 %v1625, 1.0
    %v1653 = vadd.f32 %v1627, 1.0
    %v1654 = vadd.f32 %v1629, 1.0
    %v1655 = vadd.f32 %v1631, 1.0
    %v1656 = vadd.f32 %v1633, 1.0
    %v1657 = vadd.f32 %v1635, 1.0
    %v1658 = vadd.f32 %v1637, 1.0
    %v1659 = vadd.f32 %v1639, 1.0
    %v1660 = vadd.f32 %v1641, 1.0
    %v1661 = vadd.f32 %v1643, 1.0
    %v1662 = vadd.f32 %v1645, 1.0
    %v1663 = vadd.f32 %v1647, 1.0
    %v1664 = vrcp.pop %v1648
    %v1665 = vmul.f32 %v1648, %v1664
    %v1666 = vsub.f32 1.0, %v1665
    %v1667 = vmul.f32 %v1664, %v1666
    %v1668 = vadd.f32 %v1664, %v1667
    %vm1669 = vweird.f32 %v1648
    %vm1670 = vweird.f32 %v1664
    %vm1671 = vmor %vm1669, %vm1670
    %v1672 = vsel %vm1671, %v1664, %v1668
    %v1673 = vand.u32 2147483647, %v1648
    %vm1674 = vcmp.eq.f32.partialorder %v1673, 8.507059e+37
    %v1675 = vand.u32 %v1648, 2147483648
    %v1676 = vor.u32 1.1754944e-38, %v1675
    %v1677 = vsel %vm1674, %v1676, %v1672
    %v1678 = vmul.f32 1.0, %v1677
    %v1679 = vrcp.pop %v1649
    %v1680 = vmul.f32 %v1649, %v1679
    %v1681 = vsub.f32 1.0, %v1680
    %v1682 = vmul.f32 %v1679, %v1681
    %v1683 = vadd.f32 %v1679, %v1682
    %vm1684 = vweird.f32 %v1649
    %vm1685 = vweird.f32 %v1679
    %vm1686 = vmor %vm1684, %vm1685
    %v1687 = vsel %vm1686, %v1679, %v1683
    %v1688 = vand.u32 2147483647, %v1649
    %vm1689 = vcmp.eq.f32.partialorder %v1688, 8.507059e+37
    %v1690 = vand.u32 %v1649, 2147483648
    %v1691 = vor.u32 1.1754944e-38, %v1690
    %v1692 = vsel %vm1689, %v1691, %v1687
    %v1693 = vmul.f32 1.0, %v1692
    %v1694 = vrcp.pop %v1650
    %v1695 = vmul.f32 %v1650, %v1694
    %v1696 = vsub.f32 1.0, %v1695
    %v1697 = vmul.f32 %v1694, %v1696
    %v1698 = vadd.f32 %v1694, %v1697
    %vm1699 = vweird.f32 %v1650
    %vm1700 = vweird.f32 %v1694
    %vm1701 = vmor %vm1699, %vm1700
    %v1702 = vsel %vm1701, %v1694, %v1698
    %v1703 = vand.u32 2147483647, %v1650
    %vm1704 = vcmp.eq.f32.partialorder %v1703, 8.507059e+37
    %v1705 = vand.u32 %v1650, 2147483648
    %v1706 = vor.u32 1.1754944e-38, %v1705
    %v1707 = vsel %vm1704, %v1706, %v1702
    %v1708 = vmul.f32 1.0, %v1707
    %v1709 = vrcp.pop %v1651
    %v1710 = vmul.f32 %v1651, %v1709
    %v1711 = vsub.f32 1.0, %v1710
    %v1712 = vmul.f32 %v1709, %v1711
    %v1713 = vadd.f32 %v1709, %v1712
    %vm1714 = vweird.f32 %v1651
    %vm1715 = vweird.f32 %v1709
    %vm1716 = vmor %vm1714, %vm1715
    %v1717 = vsel %vm1716, %v1709, %v1713
    %v1718 = vand.u32 2147483647, %v1651
    %vm1719 = vcmp.eq.f32.partialorder %v1718, 8.507059e+37
    %v1720 = vand.u32 %v1651, 2147483648
    %v1721 = vor.u32 1.1754944e-38, %v1720
    %v1722 = vsel %vm1719, %v1721, %v1717
    %v1723 = vmul.f32 1.0, %v1722
    %v1724 = vrcp.pop %v1652
    %v1725 = vmul.f32 %v1652, %v1724
    %v1726 = vsub.f32 1.0, %v1725
    %v1727 = vmul.f32 %v1724, %v1726
    %v1728 = vadd.f32 %v1724, %v1727
    %vm1729 = vweird.f32 %v1652
    %vm1730 = vweird.f32 %v1724
    %vm1731 = vmor %vm1729, %vm1730
    %v1732 = vsel %vm1731, %v1724, %v1728
    %v1733 = vand.u32 2147483647, %v1652
    %vm1734 = vcmp.eq.f32.partialorder %v1733, 8.507059e+37
    %v1735 = vand.u32 %v1652, 2147483648
    %v1736 = vor.u32 1.1754944e-38, %v1735
    %v1737 = vsel %vm1734, %v1736, %v1732
    %v1738 = vmul.f32 1.0, %v1737
    %v1739 = vrcp.pop %v1653
    %v1740 = vmul.f32 %v1653, %v1739
    %v1741 = vsub.f32 1.0, %v1740
    %v1742 = vmul.f32 %v1739, %v1741
    %v1743 = vadd.f32 %v1739, %v1742
    %vm1744 = vweird.f32 %v1653
    %vm1745 = vweird.f32 %v1739
    %vm1746 = vmor %vm1744, %vm1745
    %v1747 = vsel %vm1746, %v1739, %v1743
    %v1748 = vand.u32 2147483647, %v1653
    %vm1749 = vcmp.eq.f32.partialorder %v1748, 8.507059e+37
    %v1750 = vand.u32 %v1653, 2147483648
    %v1751 = vor.u32 1.1754944e-38, %v1750
    %v1752 = vsel %vm1749, %v1751, %v1747
    %v1753 = vmul.f32 1.0, %v1752
    %v1754 = vrcp.pop %v1654
    %v1755 = vmul.f32 %v1654, %v1754
    %v1756 = vsub.f32 1.0, %v1755
    %v1757 = vmul.f32 %v1754, %v1756
    %v1758 = vadd.f32 %v1754, %v1757
    %vm1759 = vweird.f32 %v1654
    %vm1760 = vweird.f32 %v1754
    %vm1761 = vmor %vm1759, %vm1760
    %v1762 = vsel %vm1761, %v1754, %v1758
    %v1763 = vand.u32 2147483647, %v1654
    %vm1764 = vcmp.eq.f32.partialorder %v1763, 8.507059e+37
    %v1765 = vand.u32 %v1654, 2147483648
    %v1766 = vor.u32 1.1754944e-38, %v1765
    %v1767 = vsel %vm1764, %v1766, %v1762
    %v1768 = vmul.f32 1.0, %v1767
    %v1769 = vrcp.pop %v1655
    %v1770 = vmul.f32 %v1655, %v1769
    %v1771 = vsub.f32 1.0, %v1770
    %v1772 = vmul.f32 %v1769, %v1771
    %v1773 = vadd.f32 %v1769, %v1772
    %vm1774 = vweird.f32 %v1655
    %vm1775 = vweird.f32 %v1769
    %vm1776 = vmor %vm1774, %vm1775
    %v1777 = vsel %vm1776, %v1769, %v1773
    %v1778 = vand.u32 2147483647, %v1655
    %vm1779 = vcmp.eq.f32.partialorder %v1778, 8.507059e+37
    %v1780 = vand.u32 %v1655, 2147483648
    %v1781 = vor.u32 1.1754944e-38, %v1780
    %v1782 = vsel %vm1779, %v1781, %v1777
    %v1783 = vmul.f32 1.0, %v1782
    %v1784 = vrcp.pop %v1656
    %v1785 = vmul.f32 %v1656, %v1784
    %v1786 = vsub.f32 1.0, %v1785
    %v1787 = vmul.f32 %v1784, %v1786
    %v1788 = vadd.f32 %v1784, %v1787
    %vm1789 = vweird.f32 %v1656
    %vm1790 = vweird.f32 %v1784
    %vm1791 = vmor %vm1789, %vm1790
    %v1792 = vsel %vm1791, %v1784, %v1788
    %v1793 = vand.u32 2147483647, %v1656
    %vm1794 = vcmp.eq.f32.partialorder %v1793, 8.507059e+37
    %v1795 = vand.u32 %v1656, 2147483648
    %v1796 = vor.u32 1.1754944e-38, %v1795
    %v1797 = vsel %vm1794, %v1796, %v1792
    %v1798 = vmul.f32 1.0, %v1797
    %v1799 = vrcp.pop %v1657
    %v1800 = vmul.f32 %v1657, %v1799
    %v1801 = vsub.f32 1.0, %v1800
    %v1802 = vmul.f32 %v1799, %v1801
    %v1803 = vadd.f32 %v1799, %v1802
    %vm1804 = vweird.f32 %v1657
    %vm1805 = vweird.f32 %v1799
    %vm1806 = vmor %vm1804, %vm1805
    %v1807 = vsel %vm1806, %v1799, %v1803
    %v1808 = vand.u32 2147483647, %v1657
    %vm1809 = vcmp.eq.f32.partialorder %v1808, 8.507059e+37
    %v1810 = vand.u32 %v1657, 2147483648
    %v1811 = vor.u32 1.1754944e-38, %v1810
    %v1812 = vsel %vm1809, %v1811, %v1807
    %v1813 = vmul.f32 1.0, %v1812
    %v1814 = vrcp.pop %v1658
    %v1815 = vmul.f32 %v1658, %v1814
    %v1816 = vsub.f32 1.0, %v1815
    %v1817 = vmul.f32 %v1814, %v1816
    %v1818 = vadd.f32 %v1814, %v1817
    %vm1819 = vweird.f32 %v1658
    %vm1820 = vweird.f32 %v1814
    %vm1821 = vmor %vm1819, %vm1820
    %v1822 = vsel %vm1821, %v1814, %v1818
    %v1823 = vand.u32 2147483647, %v1658
    %vm1824 = vcmp.eq.f32.partialorder %v1823, 8.507059e+37
    %v1825 = vand.u32 %v1658, 2147483648
    %v1826 = vor.u32 1.1754944e-38, %v1825
    %v1827 = vsel %vm1824, %v1826, %v1822
    %v1828 = vmul.f32 1.0, %v1827
    %v1829 = vrcp.pop %v1659
    %v1830 = vmul.f32 %v1659, %v1829
    %v1831 = vsub.f32 1.0, %v1830
    %v1832 = vmul.f32 %v1829, %v1831
    %v1833 = vadd.f32 %v1829, %v1832
    %vm1834 = vweird.f32 %v1659
    %vm1835 = vweird.f32 %v1829
    %vm1836 = vmor %vm1834, %vm1835
    %v1837 = vsel %vm1836, %v1829, %v1833
    %v1838 = vand.u32 2147483647, %v1659
    %vm1839 = vcmp.eq.f32.partialorder %v1838, 8.507059e+37
    %v1840 = vand.u32 %v1659, 2147483648
    %v1841 = vor.u32 1.1754944e-38, %v1840
    %v1842 = vsel %vm1839, %v1841, %v1837
    %v1843 = vmul.f32 1.0, %v1842
    %v1844 = vrcp.pop %v1660
    %v1845 = vmul.f32 %v1660, %v1844
    %v1846 = vsub.f32 1.0, %v1845
    %v1847 = vmul.f32 %v1844, %v1846
    %v1848 = vadd.f32 %v1844, %v1847
    %vm1849 = vweird.f32 %v1660
    %vm1850 = vweird.f32 %v1844
    %vm1851 = vmor %vm1849, %vm1850
    %v1852 = vsel %vm1851, %v1844, %v1848
    %v1853 = vand.u32 2147483647, %v1660
    %vm1854 = vcmp.eq.f32.partialorder %v1853, 8.507059e+37
    %v1855 = vand.u32 %v1660, 2147483648
    %v1856 = vor.u32 1.1754944e-38, %v1855
    %v1857 = vsel %vm1854, %v1856, %v1852
    %v1858 = vmul.f32 1.0, %v1857
    %v1859 = vrcp.pop %v1661
    %v1860 = vmul.f32 %v1661, %v1859
    %v1861 = vsub.f32 1.0, %v1860
    %v1862 = vmul.f32 %v1859, %v1861
    %v1863 = vadd.f32 %v1859, %v1862
    %vm1864 = vweird.f32 %v1661
    %vm1865 = vweird.f32 %v1859
    %vm1866 = vmor %vm1864, %vm1865
    %v1867 = vsel %vm1866, %v1859, %v1863
    %v1868 = vand.u32 2147483647, %v1661
    %vm1869 = vcmp.eq.f32.partialorder %v1868, 8.507059e+37
    %v1870 = vand.u32 %v1661, 2147483648
    %v1871 = vor.u32 1.1754944e-38, %v1870
    %v1872 = vsel %vm1869, %v1871, %v1867
    %v1873 = vmul.f32 1.0, %v1872
    %v1874 = vrcp.pop %v1662
    %v1875 = vmul.f32 %v1662, %v1874
    %v1876 = vsub.f32 1.0, %v1875
    %v1877 = vmul.f32 %v1874, %v1876
    %v1878 = vadd.f32 %v1874, %v1877
    %vm1879 = vweird.f32 %v1662
    %vm1880 = vweird.f32 %v1874
    %vm1881 = vmor %vm1879, %vm1880
    %v1882 = vsel %vm1881, %v1874, %v1878
    %v1883 = vand.u32 2147483647, %v1662
    %vm1884 = vcmp.eq.f32.partialorder %v1883, 8.507059e+37
    %v1885 = vand.u32 %v1662, 2147483648
    %v1886 = vor.u32 1.1754944e-38, %v1885
    %v1887 = vsel %vm1884, %v1886, %v1882
    %v1888 = vmul.f32 1.0, %v1887
    %v1889 = vrcp.pop %v1663
    %v1890 = vmul.f32 %v1663, %v1889
    %v1891 = vsub.f32 1.0, %v1890
    %v1892 = vmul.f32 %v1889, %v1891
    %v1893 = vadd.f32 %v1889, %v1892
    %vm1894 = vweird.f32 %v1663
    %vm1895 = vweird.f32 %v1889
    %vm1896 = vmor %vm1894, %vm1895
    %v1897 = vsel %vm1896, %v1889, %v1893
    %v1898 = vand.u32 2147483647, %v1663
    %vm1899 = vcmp.eq.f32.partialorder %v1898, 8.507059e+37
    %v1900 = vand.u32 %v1663, 2147483648
    %v1901 = vor.u32 1.1754944e-38, %v1900
    %v1902 = vsel %vm1899, %v1901, %v1897
    %v1903 = vmul.f32 1.0, %v1902
    %1920 = vrot.lane.b32.xlu0 %v339, 16
    %v1921 = vpop.permute.xlu0 %1920
    %1922 = vrot.lane.b32.xlu0 %v341, 16
    %v1923 = vpop.permute.xlu0 %1922
    %1924 = vrot.lane.b32.xlu0 %v344, 16
    %v1925 = vpop.permute.xlu0 %1924
    %1926 = vrot.lane.b32.xlu0 %v346, 16
    %v1927 = vpop.permute.xlu0 %1926
    %1928 = vrot.lane.b32.xlu0 %v349, 16
    %v1929 = vpop.permute.xlu0 %1928
    %1930 = vrot.lane.b32.xlu0 %v351, 16
    %v1931 = vpop.permute.xlu0 %1930
    %1932 = vrot.lane.b32.xlu0 %v354, 16
    %v1933 = vpop.permute.xlu0 %1932
    %1934 = vrot.lane.b32.xlu0 %v356, 16
    %v1935 = vpop.permute.xlu0 %1934
    %1936 = vrot.lane.b32.xlu0 %v359, 16
    %v1937 = vpop.permute.xlu0 %1936
    %1938 = vrot.lane.b32.xlu0 %v361, 16
    %v1939 = vpop.permute.xlu0 %1938
    %1940 = vrot.lane.b32.xlu0 %v364, 16
    %v1941 = vpop.permute.xlu0 %1940
    %1942 = vrot.lane.b32.xlu0 %v366, 16
    %v1943 = vpop.permute.xlu0 %1942
    %1944 = vrot.lane.b32.xlu0 %v369, 16
    %v1945 = vpop.permute.xlu0 %1944
    %1946 = vrot.lane.b32.xlu0 %v371, 16
    %v1947 = vpop.permute.xlu0 %1946
    %1948 = vrot.lane.b32.xlu0 %v374, 16
    %v1949 = vpop.permute.xlu0 %1948
    %1950 = vrot.lane.b32.xlu0 %v376, 16
    %v1951 = vpop.permute.xlu0 %1950
    %1984 = vrot.lane.b32.xlu0 %v1325, 48
    %v1985 = vpop.permute.xlu0 %1984
    %1986 = vrot.lane.b32.xlu0 %v1340, 48
    %v1987 = vpop.permute.xlu0 %1986
    %1988 = vrot.lane.b32.xlu0 %v1355, 48
    %v1989 = vpop.permute.xlu0 %1988
    %1990 = vrot.lane.b32.xlu0 %v1370, 48
    %v1991 = vpop.permute.xlu0 %1990
    %1992 = vrot.lane.b32.xlu0 %v1385, 48
    %v1993 = vpop.permute.xlu0 %1992
    %1994 = vrot.lane.b32.xlu0 %v1400, 48
    %v1995 = vpop.permute.xlu0 %1994
    %1996 = vrot.lane.b32.xlu0 %v1415, 48
    %v1997 = vpop.permute.xlu0 %1996
    %1998 = vrot.lane.b32.xlu0 %v1430, 48
    %v1999 = vpop.permute.xlu0 %1998
    %2000 = vrot.lane.b32.xlu0 %v1445, 48
    %v2001 = vpop.permute.xlu0 %2000
    %2002 = vrot.lane.b32.xlu0 %v1460, 48
    %v2003 = vpop.permute.xlu0 %2002
    %2004 = vrot.lane.b32.xlu0 %v1475, 48
    %v2005 = vpop.permute.xlu0 %2004
    %2006 = vrot.lane.b32.xlu0 %v1490, 48
    %v2007 = vpop.permute.xlu0 %2006
    %2008 = vrot.lane.b32.xlu0 %v1505, 48
    %v2009 = vpop.permute.xlu0 %2008
    %2010 = vrot.lane.b32.xlu0 %v1520, 48
    %v2011 = vpop.permute.xlu0 %2010
    %2012 = vrot.lane.b32.xlu0 %v1535, 48
    %v2013 = vpop.permute.xlu0 %2012
    %2014 = vrot.lane.b32.xlu0 %v1550, 48
    %v2015 = vpop.permute.xlu0 %2014
    %v2032 = vsel %vm873, %v842, %v1921
    %v2033 = vsel %vm873, %v843, %v1923
    %v2034 = vsel %vm873, %v844, %v1925
    %v2035 = vsel %vm873, %v845, %v1927
    %v2036 = vsel %vm873, %v846, %v1929
    %v2037 = vsel %vm873, %v847, %v1931
    %v2038 = vsel %vm873, %v848, %v1933
    %v2039 = vsel %vm873, %v849, %v1935
    %v2040 = vsel %vm873, %v850, %v1937
    %v2041 = vsel %vm873, %v851, %v1939
    %v2042 = vsel %vm873, %v852, %v1941
    %v2043 = vsel %vm873, %v853, %v1943
    %v2044 = vsel %vm873, %v854, %v1945
    %v2045 = vsel %vm873, %v855, %v1947
    %v2046 = vsel %vm873, %v856, %v1949
    %v2047 = vsel %vm873, %v857, %v1951
    %v2048 = vsel %vm84, %v2032, %v1921
    %v2049 = vsel %vm84, %v2033, %v1923
    %v2050 = vsel %vm84, %v2034, %v1925
    %v2051 = vsel %vm84, %v2035, %v1927
    %v2052 = vsel %vm84, %v2036, %v1929
    %v2053 = vsel %vm84, %v2037, %v1931
    %v2054 = vsel %vm84, %v2038, %v1933
    %v2055 = vsel %vm84, %v2039, %v1935
    %v2056 = vsel %vm84, %v2040, %v1937
    %v2057 = vsel %vm84, %v2041, %v1939
    %v2058 = vsel %vm84, %v2042, %v1941
    %v2059 = vsel %vm84, %v2043, %v1943
    %v2060 = vsel %vm84, %v2044, %v1945
    %v2061 = vsel %vm84, %v2045, %v1947
    %v2062 = vsel %vm84, %v2046, %v1949
    %v2063 = vsel %vm84, %v2047, %v1951
    %vm2064 = vcmask 392192
    %v2065 = vsel %vm2064, %v2048, %v1985
    %v2066 = vsel %vm2064, %v2049, %v1987
    %v2067 = vsel %vm2064, %v2050, %v1989
    %v2068 = vsel %vm2064, %v2051, %v1991
    %v2069 = vsel %vm2064, %v2052, %v1993
    %v2070 = vsel %vm2064, %v2053, %v1995
    %v2071 = vsel %vm2064, %v2054, %v1997
    %v2072 = vsel %vm2064, %v2055, %v1999
    %v2073 = vsel %vm2064, %v2056, %v2001
    %v2074 = vsel %vm2064, %v2057, %v2003
    %v2075 = vsel %vm2064, %v2058, %v2005
    %v2076 = vsel %vm2064, %v2059, %v2007
    %v2077 = vsel %vm2064, %v2060, %v2009
    %v2078 = vsel %vm2064, %v2061, %v2011
    %v2079 = vsel %vm2064, %v2062, %v2013
    %v2080 = vsel %vm2064, %v2063, %v2015
    %vm2081 = vcmask 654336
    %v2082 = vsel %vm2081, %v2065, 0.0
    %v2083 = vsel %vm2081, %v2066, 0.0
    %v2084 = vsel %vm2081, %v2067, 0.0
    %v2085 = vsel %vm2081, %v2068, 0.0
    %v2086 = vsel %vm2081, %v2069, 0.0
    %v2087 = vsel %vm2081, %v2070, 0.0
    %v2088 = vsel %vm2081, %v2071, 0.0
    %v2089 = vsel %vm2081, %v2072, 0.0
    %v2090 = vsel %vm2081, %v2073, 0.0
    %v2091 = vsel %vm2081, %v2074, 0.0
    %v2092 = vsel %vm2081, %v2075, 0.0
    %v2093 = vsel %vm2081, %v2076, 0.0
    %v2094 = vsel %vm2081, %v2077, 0.0
    %v2095 = vsel %vm2081, %v2078, 0.0
    %v2096 = vsel %vm2081, %v2079, 0.0
    %v2097 = vsel %vm2081, %v2080, 0.0
    %2098 = vst [vmem:[#allocation2] sm:$0xff] %v2082
    %2099 = vst [vmem:[#allocation2 + $0x8] sm:$0xff] %v2083
    %2100 = vst [vmem:[#allocation2 + $0x10] sm:$0xff] %v2084
    %2101 = vst [vmem:[#allocation2 + $0x18] sm:$0xff] %v2085
    %2102 = vst [vmem:[#allocation2 + $0x20] sm:$0xff] %v2086
    %2103 = vst [vmem:[#allocation2 + $0x28] sm:$0xff] %v2087
    %2104 = vst [vmem:[#allocation2 + $0x30] sm:$0xff] %v2088
    %2105 = vst [vmem:[#allocation2 + $0x38] sm:$0xff] %v2089
    %2106 = vst [vmem:[#allocation2 + $0x40] sm:$0xff] %v2090
    %2107 = vst [vmem:[#allocation2 + $0x48] sm:$0xff] %v2091
    %2108 = vst [vmem:[#allocation2 + $0x50] sm:$0xff] %v2092
    %2109 = vst [vmem:[#allocation2 + $0x58] sm:$0xff] %v2093
    %2110 = vst [vmem:[#allocation2 + $0x60] sm:$0xff] %v2094
    %2111 = vst [vmem:[#allocation2 + $0x68] sm:$0xff] %v2095
    %2112 = vst [vmem:[#allocation2 + $0x70] sm:$0xff] %v2096
    %2113 = vst [vmem:[#allocation2 + $0x78] sm:$0xff] %v2097
    %2114 = vst [vmem:[#allocation2 + $0x80] sm:$0xff] %v1678
    %2115 = vst [vmem:[#allocation2 + $0x88] sm:$0xff] %v1693
    %2116 = vst [vmem:[#allocation2 + $0x90] sm:$0xff] %v1708
    %2117 = vst [vmem:[#allocation2 + $0x98] sm:$0xff] %v1723
    %2118 = vst [vmem:[#allocation2 + $0xa0] sm:$0xff] %v1738
    %2119 = vst [vmem:[#allocation2 + $0xa8] sm:$0xff] %v1753
    %2120 = vst [vmem:[#allocation2 + $0xb0] sm:$0xff] %v1768
    %2121 = vst [vmem:[#allocation2 + $0xb8] sm:$0xff] %v1783
    %2122 = vst [vmem:[#allocation2 + $0xc0] sm:$0xff] %v1798
    %2123 = vst [vmem:[#allocation2 + $0xc8] sm:$0xff] %v1813
    %2124 = vst [vmem:[#allocation2 + $0xd0] sm:$0xff] %v1828
    %2125 = vst [vmem:[#allocation2 + $0xd8] sm:$0xff] %v1843
    %2126 = vst [vmem:[#allocation2 + $0xe0] sm:$0xff] %v1858
    %2127 = vst [vmem:[#allocation2 + $0xe8] sm:$0xff] %v1873
    %2128 = vst [vmem:[#allocation2 + $0xf0] sm:$0xff] %v1888
    %2129 = vst [vmem:[#allocation2 + $0xf8] sm:$0xff] %v1903
    // Predicated region
    $region18: #{tpu_custom_call.1} parent=1 // pred_check
      _
    $region19: #{tpu_custom_call.1} parent=1 // pred_check_branch
      %2131 = sbr.rel (0) target = $region21
    $region20: #{tpu_custom_call.1} parent=1 // pred_region
      %2133 = vsyncadd [#allocation3], 0
      %s2134 = sshll.u32 [#allocation2], 4
      %s2135 = int_to_ptr.vmem [resolvable:$true] %s2134
      %s2136 = sshll.u32 %s4, 4
      %s2137 = int_to_ptr.hbm [resolvable:$true] %s2136
      %2142 = dma.vmem_to_hbm [thread:$0]  %s2135, 4096, %s2137, [#allocation3], 128, 128, 8
    $region21: #{tpu_custom_call.1} parent=1 // pred_fallthru
      _
    // Predicated region
    $region22: #{tpu_custom_call.1} parent=1 // pred_check
      _
    $region23: #{tpu_custom_call.1} parent=1 // pred_check_branch
      %2144 = sbr.rel (0) target = $region25
    $region24: #{tpu_custom_call.1} parent=1 // pred_region
      %2146 = dma.done [#allocation3], 4096
    $region25: #{tpu_custom_call.1} parent=1 // pred_fallthru
      _
    %2147 = vsyncpa [#allocation3], 1

</llo_original>
